<compile_context>
chip_gen: v5e
topology: v5e:2x2
jax: 0.10.0
libtpu: 0.0.40
codegen_flags: <defaults>
</compile_context>

<pallas_src>
import functools

import jax
import jax.numpy as jnp
import numpy as np
from jax import lax
from jax.experimental import pallas as pl
from jax.experimental.pallas import tpu as pltpu


def _avgmax_kernel(feat_ref, mask_ref, out_ref, *, k, n_iter, use_complement):
    # feat_ref: (Bb, T, C)   mask_ref: (Bb, T, 1) binary f32   out_ref: (Bb, 3, C)
    x = feat_ref[...].astype(jnp.float32)     # cast in-kernel (input may be bf16)
    m = mask_ref[...]                         # (Bb, T, 1)
    Bb, T, C = x.shape

    valid = m != 0.0                          # (Bb, T, 1), broadcasts over lanes
    neg_inf = jnp.float32(-jnp.inf)
    x_neg = jnp.where(valid, x, neg_inf)      # -inf fill for max / top-k
    x_zero = jnp.where(valid, x, 0.0)         # 0 fill for sums

    # ---- masked max pool ----
    max_pool = jnp.max(x_neg, axis=1, keepdims=True)              # (Bb, 1, C)
    max_pool = jnp.where(max_pool == neg_inf, 0.0, max_pool)

    # ---- masked average pool ----
    sum_all = jnp.sum(x_zero, axis=1, keepdims=True)              # (Bb, 1, C)
    cnt = jnp.sum(valid.astype(jnp.float32), axis=1, keepdims=True)  # (Bb, 1, 1)
    cnt = jnp.maximum(cnt, 1.0)
    avg_pool = sum_all / cnt

    # ---- top-k mean via iterative selection, min(k, T-k) unrolled iterations ----
    if n_iter == 0:
        # k == T: the top-k set is everything; -inf entries contribute 0.
        topk_sum = sum_all
    else:
        row_idx = lax.broadcasted_iota(jnp.int32, (Bb, T, C), 1)
        if use_complement:
            # Sum the (T - k) smallest entries (with -inf -> 0) and subtract.
            fill = jnp.float32(jnp.inf)
            reduce_fn = functools.partial(jnp.min, axis=1, keepdims=True)
        else:
            fill = neg_inf
            reduce_fn = functools.partial(jnp.max, axis=1, keepdims=True)

        # Static unroll: n_iter is small (<= T/2); keeps carries visible to the
        # scheduler instead of an opaque loop body.
        work = x_neg
        acc = jnp.zeros((Bb, 1, C), jnp.float32)
        for _ in range(n_iter):
            cur = reduce_fn(work)                                  # (Bb, 1, C)
            acc = acc + jnp.where(cur == neg_inf, 0.0, cur)        # -inf -> 0 (torch)
            # remove exactly one (the first) occurrence of cur per column
            first = jnp.min(jnp.where(work == cur, row_idx, T),
                            axis=1, keepdims=True)                 # (Bb, 1, C)
            work = jnp.where(row_idx == first, fill, work)
        topk_sum = (sum_all - acc) if use_complement else acc

    topk_avg = topk_sum * jnp.float32(1.0 / k)

    # Direct row writes; no in-kernel concatenate.
    out_ref[:, 0:1, :] = max_pool.astype(out_ref.dtype)
    out_ref[:, 1:2, :] = avg_pool.astype(out_ref.dtype)
    out_ref[:, 2:3, :] = topk_avg.astype(out_ref.dtype)


def _pick_block_batch(B, per_example_bytes, target_bytes=1 << 20):
    """Largest divisor of B giving ~target_bytes per feature block, with >=2 grid
    blocks whenever B >= 2 (so both v7x TensorCores get work). The ~1 MiB target
    keeps in-kernel temporaries + double-buffered inputs well under the v5e
    16 MiB scoped-VMEM default, so no vmem_limit override is needed."""
    bb_cap = max(1, target_bytes // max(per_example_bytes, 1))
    if B >= 2:
        bb_cap = min(bb_cap, B // 2)
    bb_cap = int(max(1, min(bb_cap, B)))
    for d in range(bb_cap, 0, -1):
        if B % d == 0:
            return d
    return 1


def avg_max_pool(features, mask, top_k=20, block_target_bytes=1 << 20):
    """features: (B, T, C); mask: (B, T), nonzero = valid.  Returns (B, 3*C)."""
    B, T, C = features.shape
    k = min(top_k, T)
    r = T - k
    use_complement = r < k          # e.g. k=20, T=32 -> 12 iterations instead of 20
    n_iter = r if use_complement else k

    # No wrapper upcast of features (feed native dtype); binarize mask to f32.
    mask_f = (mask != 0).astype(jnp.float32).reshape(B, T, 1)

    per_ex_bytes = T * C * features.dtype.itemsize
    Bb = _pick_block_batch(B, per_ex_bytes, block_target_bytes)

    out = pl.pallas_call(
        functools.partial(_avgmax_kernel, k=k, n_iter=n_iter,
                          use_complement=use_complement),
        out_shape=jax.ShapeDtypeStruct((B, 3, C), features.dtype),
        grid=(B // Bb,),
        in_specs=[
            pl.BlockSpec((Bb, T, C), lambda b: (b, 0, 0)),
            pl.BlockSpec((Bb, T, 1), lambda b: (b, 0, 0)),
        ],
        out_specs=pl.BlockSpec((Bb, 3, C), lambda b: (b, 0, 0)),
        compiler_params=pltpu.CompilerParams(
            dimension_semantics=("parallel",)),
    )(features, mask_f)

    # (B, 3, C) -> (B, 3*C): [max | avg | topk_avg], same order as torch.cat(dim=1)
    return out.reshape(B, 3 * C)


def _reference(features, mask, top_k=20):
    """Pure-JAX reference mirroring the PyTorch forward exactly."""
    B, T, C = features.shape
    valid = (mask != 0)
    x = features.astype(jnp.float32)
    xn = jnp.where(valid[:, :, None], x, -jnp.inf)
    mx = jnp.max(xn, axis=1)
    mx = jnp.where(mx == -jnp.inf, 0.0, mx)
    xz = jnp.where(valid[:, :, None], x, 0.0)
    cnt = jnp.maximum(jnp.sum(valid, axis=1, keepdims=True).astype(jnp.float32), 1.0)
    avg = jnp.sum(xz, axis=1) / cnt
    k = min(top_k, T)
    tk = lax.top_k(jnp.transpose(xn, (0, 2, 1)), k)[0]   # (B, C, k)
    tk = jnp.where(tk == -jnp.inf, 0.0, tk)
    tka = jnp.mean(tk, axis=-1)
    return jnp.concatenate([mx, avg, tka], axis=1)


if __name__ == "__main__":
    B, T, C = 4, 32, 256
    top_k = 20  # module default; k = min(20, 32) = 20 > T/2 -> complement path (12 iters)

    key = jax.random.PRNGKey(0)
    features = jax.random.normal(key, (B, T, C), dtype=jnp.float32)

    # fully valid / partially padded / fully padded / single valid timestep
    lengths = jnp.array([T, 10, 0, 1], dtype=jnp.int32)
    mask = (jnp.arange(T)[None, :] < lengths[:, None]).astype(jnp.float32)

    out = avg_max_pool(features, mask, top_k=top_k)
    out = jax.block_until_ready(out)

    ref = _reference(features, mask, top_k=top_k)
    assert out.shape == (B, 3 * C), out.shape
    np.testing.assert_allclose(np.asarray(out), np.asarray(ref),
                               rtol=1e-5, atol=1e-5)
    print("KERNEL_OK")
</pallas_src>

<mosaic_0001>
module attributes {stable_mosaic.version = 11 : i64} {
  func.func @_avgmax_kernel(%arg0: i32, %arg1: memref<2x32x256xf32, #tpu.memory_space<vmem>>, %arg2: memref<2x32x1xf32, #tpu.memory_space<vmem>>, %arg3: memref<2x3x256xf32, #tpu.memory_space<vmem>>) attributes {dimension_semantics = [#tpu.dimension_semantics<parallel>], iteration_bounds = array<i64: 2>, scalar_prefetch = 0 : i64, scratch_operands = 0 : i64, tpu.core_type = #tpu.core_type<tc>, window_params = [{transform_indices = @transform_0, window_bounds = array<i64: 2, 32, 256>}, {transform_indices = @transform_1, window_bounds = array<i64: 2, 32, 1>}, {transform_indices = @transform_2, window_bounds = array<i64: 2, 3, 256>}]} {
    %c0 = arith.constant 0 : index
    %c0_0 = arith.constant 0 : index
    %c0_1 = arith.constant 0 : index
    %0 = vector.load %arg1[%c0, %c0_0, %c0_1] : memref<2x32x256xf32, #tpu.memory_space<vmem>>, vector<2x32x256xf32>
    %c0_2 = arith.constant 0 : index
    %c0_3 = arith.constant 0 : index
    %c0_4 = arith.constant 0 : index
    %1 = vector.load %arg2[%c0_2, %c0_3, %c0_4] : memref<2x32x1xf32, #tpu.memory_space<vmem>>, vector<2x32x1xf32>
    %cst = arith.constant 0.000000e+00 : f32
    %2 = vector.broadcast %cst : f32 to vector<2x32x1xf32>
    %3 = arith.cmpf one, %1, %2 : vector<2x32x1xf32>
    %cst_5 = arith.constant 0xFF800000 : f32
    %4 = vector.shape_cast %3 : vector<2x32x1xi1> to vector<2x32x1xi1>
    %5 = vector.broadcast %4 : vector<2x32x1xi1> to vector<2x32x256xi1>
    %6 = vector.broadcast %cst_5 : f32 to vector<2x32x256xf32>
    %7 = arith.select %5, %0, %6 : vector<2x32x256xi1>, vector<2x32x256xf32>
    %cst_6 = arith.constant 0.000000e+00 : f32
    %8 = vector.shape_cast %3 : vector<2x32x1xi1> to vector<2x32x1xi1>
    %9 = vector.broadcast %8 : vector<2x32x1xi1> to vector<2x32x256xi1>
    %10 = vector.broadcast %cst_6 : f32 to vector<2x32x256xf32>
    %11 = arith.select %9, %0, %10 : vector<2x32x256xi1>, vector<2x32x256xf32>
    %cst_7 = arith.constant dense<0xFF800000> : vector<2x256xf32>
    %12 = vector.multi_reduction <maximumf>, %7, %cst_7 [1] : vector<2x32x256xf32> to vector<2x256xf32>
    %13 = vector.shape_cast %12 : vector<2x256xf32> to vector<2x1x256xf32>
    %cst_8 = arith.constant 0xFF800000 : f32
    %14 = vector.broadcast %cst_8 : f32 to vector<2x1x256xf32>
    %15 = arith.cmpf oeq, %13, %14 : vector<2x1x256xf32>
    %cst_9 = arith.constant 0.000000e+00 : f32
    %16 = vector.broadcast %cst_9 : f32 to vector<2x1x256xf32>
    %17 = arith.select %15, %16, %13 : vector<2x1x256xi1>, vector<2x1x256xf32>
    %cst_10 = arith.constant dense<0.000000e+00> : vector<2x256xf32>
    %18 = vector.multi_reduction <add>, %11, %cst_10 [1] : vector<2x32x256xf32> to vector<2x256xf32>
    %19 = vector.shape_cast %18 : vector<2x256xf32> to vector<2x1x256xf32>
    %20 = arith.extui %3 : vector<2x32x1xi1> to vector<2x32x1xi32>
    %21 = arith.sitofp %20 : vector<2x32x1xi32> to vector<2x32x1xf32>
    %cst_11 = arith.constant dense<0.000000e+00> : vector<2x1xf32>
    %22 = vector.multi_reduction <add>, %21, %cst_11 [1] : vector<2x32x1xf32> to vector<2x1xf32>
    %23 = vector.shape_cast %22 : vector<2x1xf32> to vector<2x1x1xf32>
    %cst_12 = arith.constant 1.000000e+00 : f32
    %24 = vector.broadcast %cst_12 : f32 to vector<2x1x1xf32>
    %25 = arith.maximumf %23, %24 : vector<2x1x1xf32>
    %26 = vector.broadcast %25 : vector<2x1x1xf32> to vector<2x1x256xf32>
    %27 = arith.divf %19, %26 : vector<2x1x256xf32>
    %28 = tpu.iota {dimensions = array<i32: 1>} : vector<2x32x256xi32>
    %cst_13 = arith.constant 0.000000e+00 : f32
    %29 = vector.broadcast %cst_13 : f32 to vector<2x1x256xf32>
    %cst_14 = arith.constant dense<0x7F800000> : vector<2x256xf32>
    %30 = vector.multi_reduction <minimumf>, %7, %cst_14 [1] : vector<2x32x256xf32> to vector<2x256xf32>
    %31 = vector.shape_cast %30 : vector<2x256xf32> to vector<2x1x256xf32>
    %cst_15 = arith.constant 0xFF800000 : f32
    %32 = vector.broadcast %cst_15 : f32 to vector<2x1x256xf32>
    %33 = arith.cmpf oeq, %31, %32 : vector<2x1x256xf32>
    %cst_16 = arith.constant 0.000000e+00 : f32
    %34 = vector.broadcast %cst_16 : f32 to vector<2x1x256xf32>
    %35 = arith.select %33, %34, %31 : vector<2x1x256xi1>, vector<2x1x256xf32>
    %36 = arith.addf %29, %35 : vector<2x1x256xf32>
    %37 = vector.broadcast %31 : vector<2x1x256xf32> to vector<2x32x256xf32>
    %38 = arith.cmpf oeq, %7, %37 : vector<2x32x256xf32>
    %c32_i32 = arith.constant 32 : i32
    %39 = vector.broadcast %c32_i32 : i32 to vector<2x32x256xi32>
    %40 = arith.select %38, %28, %39 : vector<2x32x256xi1>, vector<2x32x256xi32>
    %cst_17 = arith.constant dense<2147483647> : vector<2x256xi32>
    %41 = vector.multi_reduction <minsi>, %40, %cst_17 [1] : vector<2x32x256xi32> to vector<2x256xi32>
    %42 = vector.shape_cast %41 : vector<2x256xi32> to vector<2x1x256xi32>
    %43 = vector.broadcast %42 : vector<2x1x256xi32> to vector<2x32x256xi32>
    %44 = arith.cmpi eq, %28, %43 : vector<2x32x256xi32>
    %cst_18 = arith.constant 0x7F800000 : f32
    %45 = vector.broadcast %cst_18 : f32 to vector<2x32x256xf32>
    %46 = arith.select %44, %45, %7 : vector<2x32x256xi1>, vector<2x32x256xf32>
    %cst_19 = arith.constant dense<0x7F800000> : vector<2x256xf32>
    %47 = vector.multi_reduction <minimumf>, %46, %cst_19 [1] : vector<2x32x256xf32> to vector<2x256xf32>
    %48 = vector.shape_cast %47 : vector<2x256xf32> to vector<2x1x256xf32>
    %cst_20 = arith.constant 0xFF800000 : f32
    %49 = vector.broadcast %cst_20 : f32 to vector<2x1x256xf32>
    %50 = arith.cmpf oeq, %48, %49 : vector<2x1x256xf32>
    %cst_21 = arith.constant 0.000000e+00 : f32
    %51 = vector.broadcast %cst_21 : f32 to vector<2x1x256xf32>
    %52 = arith.select %50, %51, %48 : vector<2x1x256xi1>, vector<2x1x256xf32>
    %53 = arith.addf %36, %52 : vector<2x1x256xf32>
    %54 = vector.broadcast %48 : vector<2x1x256xf32> to vector<2x32x256xf32>
    %55 = arith.cmpf oeq, %46, %54 : vector<2x32x256xf32>
    %c32_i32_22 = arith.constant 32 : i32
    %56 = vector.broadcast %c32_i32_22 : i32 to vector<2x32x256xi32>
    %57 = arith.select %55, %28, %56 : vector<2x32x256xi1>, vector<2x32x256xi32>
    %cst_23 = arith.constant dense<2147483647> : vector<2x256xi32>
    %58 = vector.multi_reduction <minsi>, %57, %cst_23 [1] : vector<2x32x256xi32> to vector<2x256xi32>
    %59 = vector.shape_cast %58 : vector<2x256xi32> to vector<2x1x256xi32>
    %60 = vector.broadcast %59 : vector<2x1x256xi32> to vector<2x32x256xi32>
    %61 = arith.cmpi eq, %28, %60 : vector<2x32x256xi32>
    %cst_24 = arith.constant 0x7F800000 : f32
    %62 = vector.broadcast %cst_24 : f32 to vector<2x32x256xf32>
    %63 = arith.select %61, %62, %46 : vector<2x32x256xi1>, vector<2x32x256xf32>
    %cst_25 = arith.constant dense<0x7F800000> : vector<2x256xf32>
    %64 = vector.multi_reduction <minimumf>, %63, %cst_25 [1] : vector<2x32x256xf32> to vector<2x256xf32>
    %65 = vector.shape_cast %64 : vector<2x256xf32> to vector<2x1x256xf32>
    %cst_26 = arith.constant 0xFF800000 : f32
    %66 = vector.broadcast %cst_26 : f32 to vector<2x1x256xf32>
    %67 = arith.cmpf oeq, %65, %66 : vector<2x1x256xf32>
    %cst_27 = arith.constant 0.000000e+00 : f32
    %68 = vector.broadcast %cst_27 : f32 to vector<2x1x256xf32>
    %69 = arith.select %67, %68, %65 : vector<2x1x256xi1>, vector<2x1x256xf32>
    %70 = arith.addf %53, %69 : vector<2x1x256xf32>
    %71 = vector.broadcast %65 : vector<2x1x256xf32> to vector<2x32x256xf32>
    %72 = arith.cmpf oeq, %63, %71 : vector<2x32x256xf32>
    %c32_i32_28 = arith.constant 32 : i32
    %73 = vector.broadcast %c32_i32_28 : i32 to vector<2x32x256xi32>
    %74 = arith.select %72, %28, %73 : vector<2x32x256xi1>, vector<2x32x256xi32>
    %cst_29 = arith.constant dense<2147483647> : vector<2x256xi32>
    %75 = vector.multi_reduction <minsi>, %74, %cst_29 [1] : vector<2x32x256xi32> to vector<2x256xi32>
    %76 = vector.shape_cast %75 : vector<2x256xi32> to vector<2x1x256xi32>
    %77 = vector.broadcast %76 : vector<2x1x256xi32> to vector<2x32x256xi32>
    %78 = arith.cmpi eq, %28, %77 : vector<2x32x256xi32>
    %cst_30 = arith.constant 0x7F800000 : f32
    %79 = vector.broadcast %cst_30 : f32 to vector<2x32x256xf32>
    %80 = arith.select %78, %79, %63 : vector<2x32x256xi1>, vector<2x32x256xf32>
    %cst_31 = arith.constant dense<0x7F800000> : vector<2x256xf32>
    %81 = vector.multi_reduction <minimumf>, %80, %cst_31 [1] : vector<2x32x256xf32> to vector<2x256xf32>
    %82 = vector.shape_cast %81 : vector<2x256xf32> to vector<2x1x256xf32>
    %cst_32 = arith.constant 0xFF800000 : f32
    %83 = vector.broadcast %cst_32 : f32 to vector<2x1x256xf32>
    %84 = arith.cmpf oeq, %82, %83 : vector<2x1x256xf32>
    %cst_33 = arith.constant 0.000000e+00 : f32
    %85 = vector.broadcast %cst_33 : f32 to vector<2x1x256xf32>
    %86 = arith.select %84, %85, %82 : vector<2x1x256xi1>, vector<2x1x256xf32>
    %87 = arith.addf %70, %86 : vector<2x1x256xf32>
    %88 = vector.broadcast %82 : vector<2x1x256xf32> to vector<2x32x256xf32>
    %89 = arith.cmpf oeq, %80, %88 : vector<2x32x256xf32>
    %c32_i32_34 = arith.constant 32 : i32
    %90 = vector.broadcast %c32_i32_34 : i32 to vector<2x32x256xi32>
    %91 = arith.select %89, %28, %90 : vector<2x32x256xi1>, vector<2x32x256xi32>
    %cst_35 = arith.constant dense<2147483647> : vector<2x256xi32>
    %92 = vector.multi_reduction <minsi>, %91, %cst_35 [1] : vector<2x32x256xi32> to vector<2x256xi32>
    %93 = vector.shape_cast %92 : vector<2x256xi32> to vector<2x1x256xi32>
    %94 = vector.broadcast %93 : vector<2x1x256xi32> to vector<2x32x256xi32>
    %95 = arith.cmpi eq, %28, %94 : vector<2x32x256xi32>
    %cst_36 = arith.constant 0x7F800000 : f32
    %96 = vector.broadcast %cst_36 : f32 to vector<2x32x256xf32>
    %97 = arith.select %95, %96, %80 : vector<2x32x256xi1>, vector<2x32x256xf32>
    %cst_37 = arith.constant dense<0x7F800000> : vector<2x256xf32>
    %98 = vector.multi_reduction <minimumf>, %97, %cst_37 [1] : vector<2x32x256xf32> to vector<2x256xf32>
    %99 = vector.shape_cast %98 : vector<2x256xf32> to vector<2x1x256xf32>
    %cst_38 = arith.constant 0xFF800000 : f32
    %100 = vector.broadcast %cst_38 : f32 to vector<2x1x256xf32>
    %101 = arith.cmpf oeq, %99, %100 : vector<2x1x256xf32>
    %cst_39 = arith.constant 0.000000e+00 : f32
    %102 = vector.broadcast %cst_39 : f32 to vector<2x1x256xf32>
    %103 = arith.select %101, %102, %99 : vector<2x1x256xi1>, vector<2x1x256xf32>
    %104 = arith.addf %87, %103 : vector<2x1x256xf32>
    %105 = vector.broadcast %99 : vector<2x1x256xf32> to vector<2x32x256xf32>
    %106 = arith.cmpf oeq, %97, %105 : vector<2x32x256xf32>
    %c32_i32_40 = arith.constant 32 : i32
    %107 = vector.broadcast %c32_i32_40 : i32 to vector<2x32x256xi32>
    %108 = arith.select %106, %28, %107 : vector<2x32x256xi1>, vector<2x32x256xi32>
    %cst_41 = arith.constant dense<2147483647> : vector<2x256xi32>
    %109 = vector.multi_reduction <minsi>, %108, %cst_41 [1] : vector<2x32x256xi32> to vector<2x256xi32>
    %110 = vector.shape_cast %109 : vector<2x256xi32> to vector<2x1x256xi32>
    %111 = vector.broadcast %110 : vector<2x1x256xi32> to vector<2x32x256xi32>
    %112 = arith.cmpi eq, %28, %111 : vector<2x32x256xi32>
    %cst_42 = arith.constant 0x7F800000 : f32
    %113 = vector.broadcast %cst_42 : f32 to vector<2x32x256xf32>
    %114 = arith.select %112, %113, %97 : vector<2x32x256xi1>, vector<2x32x256xf32>
    %cst_43 = arith.constant dense<0x7F800000> : vector<2x256xf32>
    %115 = vector.multi_reduction <minimumf>, %114, %cst_43 [1] : vector<2x32x256xf32> to vector<2x256xf32>
    %116 = vector.shape_cast %115 : vector<2x256xf32> to vector<2x1x256xf32>
    %cst_44 = arith.constant 0xFF800000 : f32
    %117 = vector.broadcast %cst_44 : f32 to vector<2x1x256xf32>
    %118 = arith.cmpf oeq, %116, %117 : vector<2x1x256xf32>
    %cst_45 = arith.constant 0.000000e+00 : f32
    %119 = vector.broadcast %cst_45 : f32 to vector<2x1x256xf32>
    %120 = arith.select %118, %119, %116 : vector<2x1x256xi1>, vector<2x1x256xf32>
    %121 = arith.addf %104, %120 : vector<2x1x256xf32>
    %122 = vector.broadcast %116 : vector<2x1x256xf32> to vector<2x32x256xf32>
    %123 = arith.cmpf oeq, %114, %122 : vector<2x32x256xf32>
    %c32_i32_46 = arith.constant 32 : i32
    %124 = vector.broadcast %c32_i32_46 : i32 to vector<2x32x256xi32>
    %125 = arith.select %123, %28, %124 : vector<2x32x256xi1>, vector<2x32x256xi32>
    %cst_47 = arith.constant dense<2147483647> : vector<2x256xi32>
    %126 = vector.multi_reduction <minsi>, %125, %cst_47 [1] : vector<2x32x256xi32> to vector<2x256xi32>
    %127 = vector.shape_cast %126 : vector<2x256xi32> to vector<2x1x256xi32>
    %128 = vector.broadcast %127 : vector<2x1x256xi32> to vector<2x32x256xi32>
    %129 = arith.cmpi eq, %28, %128 : vector<2x32x256xi32>
    %cst_48 = arith.constant 0x7F800000 : f32
    %130 = vector.broadcast %cst_48 : f32 to vector<2x32x256xf32>
    %131 = arith.select %129, %130, %114 : vector<2x32x256xi1>, vector<2x32x256xf32>
    %cst_49 = arith.constant dense<0x7F800000> : vector<2x256xf32>
    %132 = vector.multi_reduction <minimumf>, %131, %cst_49 [1] : vector<2x32x256xf32> to vector<2x256xf32>
    %133 = vector.shape_cast %132 : vector<2x256xf32> to vector<2x1x256xf32>
    %cst_50 = arith.constant 0xFF800000 : f32
    %134 = vector.broadcast %cst_50 : f32 to vector<2x1x256xf32>
    %135 = arith.cmpf oeq, %133, %134 : vector<2x1x256xf32>
    %cst_51 = arith.constant 0.000000e+00 : f32
    %136 = vector.broadcast %cst_51 : f32 to vector<2x1x256xf32>
    %137 = arith.select %135, %136, %133 : vector<2x1x256xi1>, vector<2x1x256xf32>
    %138 = arith.addf %121, %137 : vector<2x1x256xf32>
    %139 = vector.broadcast %133 : vector<2x1x256xf32> to vector<2x32x256xf32>
    %140 = arith.cmpf oeq, %131, %139 : vector<2x32x256xf32>
    %c32_i32_52 = arith.constant 32 : i32
    %141 = vector.broadcast %c32_i32_52 : i32 to vector<2x32x256xi32>
    %142 = arith.select %140, %28, %141 : vector<2x32x256xi1>, vector<2x32x256xi32>
    %cst_53 = arith.constant dense<2147483647> : vector<2x256xi32>
    %143 = vector.multi_reduction <minsi>, %142, %cst_53 [1] : vector<2x32x256xi32> to vector<2x256xi32>
    %144 = vector.shape_cast %143 : vector<2x256xi32> to vector<2x1x256xi32>
    %145 = vector.broadcast %144 : vector<2x1x256xi32> to vector<2x32x256xi32>
    %146 = arith.cmpi eq, %28, %145 : vector<2x32x256xi32>
    %cst_54 = arith.constant 0x7F800000 : f32
    %147 = vector.broadcast %cst_54 : f32 to vector<2x32x256xf32>
    %148 = arith.select %146, %147, %131 : vector<2x32x256xi1>, vector<2x32x256xf32>
    %cst_55 = arith.constant dense<0x7F800000> : vector<2x256xf32>
    %149 = vector.multi_reduction <minimumf>, %148, %cst_55 [1] : vector<2x32x256xf32> to vector<2x256xf32>
    %150 = vector.shape_cast %149 : vector<2x256xf32> to vector<2x1x256xf32>
    %cst_56 = arith.constant 0xFF800000 : f32
    %151 = vector.broadcast %cst_56 : f32 to vector<2x1x256xf32>
    %152 = arith.cmpf oeq, %150, %151 : vector<2x1x256xf32>
    %cst_57 = arith.constant 0.000000e+00 : f32
    %153 = vector.broadcast %cst_57 : f32 to vector<2x1x256xf32>
    %154 = arith.select %152, %153, %150 : vector<2x1x256xi1>, vector<2x1x256xf32>
    %155 = arith.addf %138, %154 : vector<2x1x256xf32>
    %156 = vector.broadcast %150 : vector<2x1x256xf32> to vector<2x32x256xf32>
    %157 = arith.cmpf oeq, %148, %156 : vector<2x32x256xf32>
    %c32_i32_58 = arith.constant 32 : i32
    %158 = vector.broadcast %c32_i32_58 : i32 to vector<2x32x256xi32>
    %159 = arith.select %157, %28, %158 : vector<2x32x256xi1>, vector<2x32x256xi32>
    %cst_59 = arith.constant dense<2147483647> : vector<2x256xi32>
    %160 = vector.multi_reduction <minsi>, %159, %cst_59 [1] : vector<2x32x256xi32> to vector<2x256xi32>
    %161 = vector.shape_cast %160 : vector<2x256xi32> to vector<2x1x256xi32>
    %162 = vector.broadcast %161 : vector<2x1x256xi32> to vector<2x32x256xi32>
    %163 = arith.cmpi eq, %28, %162 : vector<2x32x256xi32>
    %cst_60 = arith.constant 0x7F800000 : f32
    %164 = vector.broadcast %cst_60 : f32 to vector<2x32x256xf32>
    %165 = arith.select %163, %164, %148 : vector<2x32x256xi1>, vector<2x32x256xf32>
    %cst_61 = arith.constant dense<0x7F800000> : vector<2x256xf32>
    %166 = vector.multi_reduction <minimumf>, %165, %cst_61 [1] : vector<2x32x256xf32> to vector<2x256xf32>
    %167 = vector.shape_cast %166 : vector<2x256xf32> to vector<2x1x256xf32>
    %cst_62 = arith.constant 0xFF800000 : f32
    %168 = vector.broadcast %cst_62 : f32 to vector<2x1x256xf32>
    %169 = arith.cmpf oeq, %167, %168 : vector<2x1x256xf32>
    %cst_63 = arith.constant 0.000000e+00 : f32
    %170 = vector.broadcast %cst_63 : f32 to vector<2x1x256xf32>
    %171 = arith.select %169, %170, %167 : vector<2x1x256xi1>, vector<2x1x256xf32>
    %172 = arith.addf %155, %171 : vector<2x1x256xf32>
    %173 = vector.broadcast %167 : vector<2x1x256xf32> to vector<2x32x256xf32>
    %174 = arith.cmpf oeq, %165, %173 : vector<2x32x256xf32>
    %c32_i32_64 = arith.constant 32 : i32
    %175 = vector.broadcast %c32_i32_64 : i32 to vector<2x32x256xi32>
    %176 = arith.select %174, %28, %175 : vector<2x32x256xi1>, vector<2x32x256xi32>
    %cst_65 = arith.constant dense<2147483647> : vector<2x256xi32>
    %177 = vector.multi_reduction <minsi>, %176, %cst_65 [1] : vector<2x32x256xi32> to vector<2x256xi32>
    %178 = vector.shape_cast %177 : vector<2x256xi32> to vector<2x1x256xi32>
    %179 = vector.broadcast %178 : vector<2x1x256xi32> to vector<2x32x256xi32>
    %180 = arith.cmpi eq, %28, %179 : vector<2x32x256xi32>
    %cst_66 = arith.constant 0x7F800000 : f32
    %181 = vector.broadcast %cst_66 : f32 to vector<2x32x256xf32>
    %182 = arith.select %180, %181, %165 : vector<2x32x256xi1>, vector<2x32x256xf32>
    %cst_67 = arith.constant dense<0x7F800000> : vector<2x256xf32>
    %183 = vector.multi_reduction <minimumf>, %182, %cst_67 [1] : vector<2x32x256xf32> to vector<2x256xf32>
    %184 = vector.shape_cast %183 : vector<2x256xf32> to vector<2x1x256xf32>
    %cst_68 = arith.constant 0xFF800000 : f32
    %185 = vector.broadcast %cst_68 : f32 to vector<2x1x256xf32>
    %186 = arith.cmpf oeq, %184, %185 : vector<2x1x256xf32>
    %cst_69 = arith.constant 0.000000e+00 : f32
    %187 = vector.broadcast %cst_69 : f32 to vector<2x1x256xf32>
    %188 = arith.select %186, %187, %184 : vector<2x1x256xi1>, vector<2x1x256xf32>
    %189 = arith.addf %172, %188 : vector<2x1x256xf32>
    %190 = vector.broadcast %184 : vector<2x1x256xf32> to vector<2x32x256xf32>
    %191 = arith.cmpf oeq, %182, %190 : vector<2x32x256xf32>
    %c32_i32_70 = arith.constant 32 : i32
    %192 = vector.broadcast %c32_i32_70 : i32 to vector<2x32x256xi32>
    %193 = arith.select %191, %28, %192 : vector<2x32x256xi1>, vector<2x32x256xi32>
    %cst_71 = arith.constant dense<2147483647> : vector<2x256xi32>
    %194 = vector.multi_reduction <minsi>, %193, %cst_71 [1] : vector<2x32x256xi32> to vector<2x256xi32>
    %195 = vector.shape_cast %194 : vector<2x256xi32> to vector<2x1x256xi32>
    %196 = vector.broadcast %195 : vector<2x1x256xi32> to vector<2x32x256xi32>
    %197 = arith.cmpi eq, %28, %196 : vector<2x32x256xi32>
    %cst_72 = arith.constant 0x7F800000 : f32
    %198 = vector.broadcast %cst_72 : f32 to vector<2x32x256xf32>
    %199 = arith.select %197, %198, %182 : vector<2x32x256xi1>, vector<2x32x256xf32>
    %cst_73 = arith.constant dense<0x7F800000> : vector<2x256xf32>
    %200 = vector.multi_reduction <minimumf>, %199, %cst_73 [1] : vector<2x32x256xf32> to vector<2x256xf32>
    %201 = vector.shape_cast %200 : vector<2x256xf32> to vector<2x1x256xf32>
    %cst_74 = arith.constant 0xFF800000 : f32
    %202 = vector.broadcast %cst_74 : f32 to vector<2x1x256xf32>
    %203 = arith.cmpf oeq, %201, %202 : vector<2x1x256xf32>
    %cst_75 = arith.constant 0.000000e+00 : f32
    %204 = vector.broadcast %cst_75 : f32 to vector<2x1x256xf32>
    %205 = arith.select %203, %204, %201 : vector<2x1x256xi1>, vector<2x1x256xf32>
    %206 = arith.addf %189, %205 : vector<2x1x256xf32>
    %207 = vector.broadcast %201 : vector<2x1x256xf32> to vector<2x32x256xf32>
    %208 = arith.cmpf oeq, %199, %207 : vector<2x32x256xf32>
    %c32_i32_76 = arith.constant 32 : i32
    %209 = vector.broadcast %c32_i32_76 : i32 to vector<2x32x256xi32>
    %210 = arith.select %208, %28, %209 : vector<2x32x256xi1>, vector<2x32x256xi32>
    %cst_77 = arith.constant dense<2147483647> : vector<2x256xi32>
    %211 = vector.multi_reduction <minsi>, %210, %cst_77 [1] : vector<2x32x256xi32> to vector<2x256xi32>
    %212 = vector.shape_cast %211 : vector<2x256xi32> to vector<2x1x256xi32>
    %213 = vector.broadcast %212 : vector<2x1x256xi32> to vector<2x32x256xi32>
    %214 = arith.cmpi eq, %28, %213 : vector<2x32x256xi32>
    %cst_78 = arith.constant 0x7F800000 : f32
    %215 = vector.broadcast %cst_78 : f32 to vector<2x32x256xf32>
    %216 = arith.select %214, %215, %199 : vector<2x32x256xi1>, vector<2x32x256xf32>
    %cst_79 = arith.constant dense<0x7F800000> : vector<2x256xf32>
    %217 = vector.multi_reduction <minimumf>, %216, %cst_79 [1] : vector<2x32x256xf32> to vector<2x256xf32>
    %218 = vector.shape_cast %217 : vector<2x256xf32> to vector<2x1x256xf32>
    %cst_80 = arith.constant 0xFF800000 : f32
    %219 = vector.broadcast %cst_80 : f32 to vector<2x1x256xf32>
    %220 = arith.cmpf oeq, %218, %219 : vector<2x1x256xf32>
    %cst_81 = arith.constant 0.000000e+00 : f32
    %221 = vector.broadcast %cst_81 : f32 to vector<2x1x256xf32>
    %222 = arith.select %220, %221, %218 : vector<2x1x256xi1>, vector<2x1x256xf32>
    %223 = arith.addf %206, %222 : vector<2x1x256xf32>
    %224 = arith.subf %19, %223 : vector<2x1x256xf32>
    %cst_82 = arith.constant 5.000000e-02 : f32
    %225 = vector.broadcast %cst_82 : f32 to vector<2x1x256xf32>
    %226 = arith.mulf %224, %225 : vector<2x1x256xf32>
    %c0_83 = arith.constant 0 : index
    %c0_84 = arith.constant 0 : index
    %c0_85 = arith.constant 0 : index
    %227 = vector.load %arg3[%c0_83, %c0_84, %c0_85] : memref<2x3x256xf32, #tpu.memory_space<vmem>>, vector<2x1x256xf32>
    tpu.vector_store %arg3[%c0_83, %c0_84, %c0_85], %17 {strides = array<i32>} : memref<2x3x256xf32, #tpu.memory_space<vmem>>, vector<2x1x256xf32>,
    %c0_86 = arith.constant 0 : index
    %c1 = arith.constant 1 : index
    %c0_87 = arith.constant 0 : index
    %228 = vector.load %arg3[%c0_86, %c1, %c0_87] : memref<2x3x256xf32, #tpu.memory_space<vmem>>, vector<2x1x256xf32>
    tpu.vector_store %arg3[%c0_86, %c1, %c0_87], %27 {strides = array<i32>} : memref<2x3x256xf32, #tpu.memory_space<vmem>>, vector<2x1x256xf32>,
    %c0_88 = arith.constant 0 : index
    %c2 = arith.constant 2 : index
    %c0_89 = arith.constant 0 : index
    %229 = vector.load %arg3[%c0_88, %c2, %c0_89] : memref<2x3x256xf32, #tpu.memory_space<vmem>>, vector<2x1x256xf32>
    tpu.vector_store %arg3[%c0_88, %c2, %c0_89], %226 {strides = array<i32>} : memref<2x3x256xf32, #tpu.memory_space<vmem>>, vector<2x1x256xf32>,
    return
  }
  func.func @transform_0(%arg0: i32) -> (i32, i32, i32) {
    %c0_i32 = arith.constant 0 : i32
    %c0_i32_0 = arith.constant 0 : i32
    %c0_i32_1 = arith.constant 0 : i32
    return %arg0, %c0_i32, %c0_i32_0 : i32, i32, i32
  }
  func.func @transform_1(%arg0: i32) -> (i32, i32, i32) {
    %c0_i32 = arith.constant 0 : i32
    %c0_i32_0 = arith.constant 0 : i32
    %c0_i32_1 = arith.constant 0 : i32
    return %arg0, %c0_i32, %c0_i32_0 : i32, i32, i32
  }
  func.func @transform_2(%arg0: i32) -> (i32, i32, i32) {
    %c0_i32 = arith.constant 0 : i32
    %c0_i32_0 = arith.constant 0 : i32
    %c0_i32_1 = arith.constant 0 : i32
    return %arg0, %c0_i32, %c0_i32_0 : i32, i32, i32
  }
}

</mosaic_0001>

<llo_original>
// kernel: tpu_custom_call.1
$region0: #{tpu_custom_call.1}
  #allocation0 [shape = 'u32[]', space=smem, size = 0x4, offset = 0x4, fixed_abs, tag = 'smem constant byte address 0x4 - core index']
  #allocation1 [shape = 'u32[72,128]{1,0:T(1,128)}', space=vmem, size = 0x9000, scoped, tag = 'internal scratch']
  %s0 = inlined_call_operand.hbm [shape: f32[4,32,256], index: 0, kind: input, shape index: {}]
  %s1 = inlined_call_operand.vmem [shape: f32[4,32,1], index: 1, kind: input, shape index: {}]
  %s2 = inlined_call_operand.vmem [shape: f32[4,3,256], index: 2, kind: output, shape index: {}]
  %s3 = sld [smem:[#allocation0]]
  $region45: #{tpu_custom_call.1} parent=0
    _
  %s5 = ssub.s32 1, %s3
  %s6 = scalar_select 0, %s5, %s3
  $region1: #{tpu_custom_call.1} parent=0
    #allocation2 [shape = 'u8[131072]{0}', space=vmem, size = 0x20000, scoped, tag = 'input window, operand 0']
    #allocation3 [shape = 's32[2]{0}', space=sflag, size = 0x8, scoped, tag = 'scoped memory for tpu_custom_call.1']
    %7 = vsyncpa [#allocation3], 0
    %s8 = scalar_lea.sflag [#allocation3], 1
    %9 = vsyncpa %s8, 0
    loop: start=0, step=1, limit=4
    $region2: #{tpu_custom_call.1} parent=1 // loop_pre_header
      _
    $region3: #{tpu_custom_call.1} parent=1 // loop_header
      %s11 = sphi 0, %s15
      %p12 = scmp.ge.s32.totalorder %s11, 4
      %s21 = sphi 0, %s23
      %s24 = sphi 0, %s21
      %s25 = sphi 0, %s24
      %s41 = sphi 0, %s25
      %s47 = sphi 0, %s49
      %s50 = sphi 0, %s47
      %s51 = sphi 0, %s50
      %s67 = sphi 0, %s51
      %s73 = sphi 0, %s75
      %s76 = sphi 0, %s73
      %s77 = sphi 0, %s76
      %s93 = sphi 0, %s77
    $region4: #{tpu_custom_call.1} parent=1 // loop_header_branch
      %14 = sbr.rel (%p12) target = $region8
    $region5: #{tpu_custom_call.1} parent=1 // loop_body
      %s16 = ssub.s32 %s11, 1
      %s17 = ssub.s32 %s11, 2
      %s18 = sadd.s32 %s11, 1
      %s19 = ssub.s32 %s11, %s18
      %p20 = scmp.eq.s32.totalorder %s19, 0
      %s22 = sadd.s32 %s21, 1
      %s23 = scalar_select %p20, %s21, %s22
      %p26 = pneg %p20
      %p27 = scmp.eq.s32.totalorder %s11, 1
      %p28 = por %p26, %p27
      %p29 = scmp.ne.s32.totalorder %s21, %s24
      %p30 = scmp.eq.s32.totalorder %s11, 0
      %p31 = por %p29, %p30
      %p32 = scmp.ne.s32.totalorder %s21, %s24
      %p33 = scmp.eq.s32.totalorder %s16, 1
      %p34 = por %p32, %p33
      %p35 = scmp.ne.s32.totalorder %s24, %s25
      %p36 = scmp.eq.s32.totalorder %s16, 0
      %p37 = por %p35, %p36
      %p38 = scmp.ne.s32.totalorder %s24, %s25
      %p39 = scmp.eq.s32.totalorder %s17, 1
      %p40 = por %p38, %p39
      %p42 = scmp.ne.s32.totalorder %s25, %s41
      %p43 = scmp.eq.s32.totalorder %s17, 0
      %p44 = por %p42, %p43
      %s45 = ssub.s32 %s11, %s18
      %p46 = scmp.eq.s32.totalorder %s45, 0
      %s48 = sadd.s32 %s47, 1
      %s49 = scalar_select %p46, %s47, %s48
      %p52 = pneg %p46
      %p53 = scmp.eq.s32.totalorder %s11, 1
      %p54 = por %p52, %p53
      %p55 = scmp.ne.s32.totalorder %s47, %s50
      %p56 = scmp.eq.s32.totalorder %s11, 0
      %p57 = por %p55, %p56
      %p58 = scmp.ne.s32.totalorder %s47, %s50
      %p59 = scmp.eq.s32.totalorder %s16, 1
      %p60 = por %p58, %p59
      %p61 = scmp.ne.s32.totalorder %s50, %s51
      %p62 = scmp.eq.s32.totalorder %s16, 0
      %p63 = por %p61, %p62
      %p64 = scmp.ne.s32.totalorder %s50, %s51
      %p65 = scmp.eq.s32.totalorder %s17, 1
      %p66 = por %p64, %p65
      %p68 = scmp.ne.s32.totalorder %s51, %s67
      %p69 = scmp.eq.s32.totalorder %s17, 0
      %p70 = por %p68, %p69
      %s71 = ssub.s32 %s11, %s18
      %p72 = scmp.eq.s32.totalorder %s71, 0
      %s74 = sadd.s32 %s73, 1
      %s75 = scalar_select %p72, %s73, %s74
      %p78 = pneg %p72
      %p79 = scmp.eq.s32.totalorder %s11, 1
      %p80 = por %p78, %p79
      %p81 = scmp.ne.s32.totalorder %s73, %s76
      %p82 = scmp.eq.s32.totalorder %s11, 0
      %p83 = por %p81, %p82
      %p84 = scmp.ne.s32.totalorder %s73, %s76
      %p85 = scmp.eq.s32.totalorder %s16, 1
      %p86 = por %p84, %p85
      %p87 = scmp.ne.s32.totalorder %s76, %s77
      %p88 = scmp.eq.s32.totalorder %s16, 0
      %p89 = por %p87, %p88
      %p90 = scmp.ne.s32.totalorder %s76, %s77
      %p91 = scmp.eq.s32.totalorder %s17, 1
      %p92 = por %p90, %p91
      %p94 = scmp.ne.s32.totalorder %s77, %s93
      %p95 = scmp.eq.s32.totalorder %s17, 0
      %p96 = por %p94, %p95
      %p97 = scmp.le.s32.totalorder 1, %s11
      %p98 = scmp.lt.s32.totalorder %s11, 3
      %p99 = pnand %p97, %p98
      %p100 = pneg %p99
      // Predicated region
      $region9: #{tpu_custom_call.1} parent=5 // pred_check
        _
      $region10: #{tpu_custom_call.1} parent=5 // pred_check_branch
        %102 = sbr.rel (%p99) target = $region12
      $region11: #{tpu_custom_call.1} parent=5 // pred_region
        %s103 = ssub.s32 %s11, 1
      $region12: #{tpu_custom_call.1} parent=5 // pred_fallthru
        _
      %p104 = scmp.lt.s32.totalorder %s11, 2
      // Predicated region
      $region13: #{tpu_custom_call.1} parent=5 // pred_check
        %p105 = pneg %p104
      $region14: #{tpu_custom_call.1} parent=5 // pred_check_branch
        %107 = sbr.rel (%p105) target = $region16
      $region15: #{tpu_custom_call.1} parent=5 // pred_region
        // Predicated region
        $region17: #{tpu_custom_call.1} parent=15 // pred_check
          %p108 = pneg %p31
        $region18: #{tpu_custom_call.1} parent=15 // pred_check_branch
          %110 = sbr.rel (%p108) target = $region20
        $region19: #{tpu_custom_call.1} parent=15 // pred_region
          %s111 = sand.u32 %s21, 1
          %s112 = scalar_lea.sflag [#allocation3], %s111
          %s113 = sand.u32 %s21, 1
          %s114 = smul.addr %s113, 128
          %s115 = scalar_lea.vmem [#allocation2], %s114
          %s116 = smul.u32 2, %s11
          %118 = vsyncadd %s112, 0
          %s119 = smul.addr %s116, 8
          %s120 = smul.addr %s119, 8
          %s121 = scalar_lea.hbm %s0, %s120
          %s122 = sshll.u32 %s121, 4
          %s123 = int_to_ptr.hbm [resolvable:$true] %s122
          %s124 = sshll.u32 %s115, 4
          %s125 = int_to_ptr.vmem [resolvable:$true] %s124
          %130 = dma.hbm_to_vmem [thread:$0]  %s123, 2048, %s125, %s112, 256, 256, 16
        $region20: #{tpu_custom_call.1} parent=15 // pred_fallthru
          _
        // Predicated region
        $region21: #{tpu_custom_call.1} parent=15 // pred_check
          %p131 = pneg %p57
        $region22: #{tpu_custom_call.1} parent=15 // pred_check_branch
          %133 = sbr.rel (%p131) target = $region24
        $region23: #{tpu_custom_call.1} parent=15 // pred_region
          %s134 = smul.u32 2, %s11
          %p135 = scmp.lt.s32.totalorder %s134, 3
          %s136 = scalar_select %p135, %s134, 3
          %s137 = smul.addr %s136, 4
          %s138 = smul.addr %s137, 8
          %s139 = scalar_lea.vmem %s1, %s138
          %s140 = smul.u32 2, %s11
        $region24: #{tpu_custom_call.1} parent=15 // pred_fallthru
          _
      $region16: #{tpu_custom_call.1} parent=5 // pred_fallthru
        _
      %p141 = scmp.le.s32.totalorder 1, %s11
      %p142 = scmp.lt.s32.totalorder %s11, 3
      %p143 = pnand %p141, %p142
      %p144 = pneg %p143
      // Predicated region
      $region25: #{tpu_custom_call.1} parent=5 // pred_check
        _
      $region26: #{tpu_custom_call.1} parent=5 // pred_check_branch
        %146 = sbr.rel (%p143) target = $region28
      $region27: #{tpu_custom_call.1} parent=5 // pred_region
        %s147 = ssub.s32 %s11, 1
        %s148 = sand.u32 %s24, 1
        %s149 = scalar_lea.sflag [#allocation3], %s148
        %s150 = sand.u32 %s24, 1
        %s151 = smul.addr %s150, 128
        %s152 = scalar_lea.vmem [#allocation2], %s151
        // Predicated region
        $region29: #{tpu_custom_call.1} parent=27 // pred_check
          %p153 = pneg %p37
        $region30: #{tpu_custom_call.1} parent=27 // pred_check_branch
          %155 = sbr.rel (%p153) target = $region32
        $region31: #{tpu_custom_call.1} parent=27 // pred_region
          %157 = dma.done %s149, 2048
        $region32: #{tpu_custom_call.1} parent=27 // pred_fallthru
          _
        %s158 = sand.u32 %s24, 1
        %s159 = scalar_lea.sflag [#allocation3], %s158
        %s160 = sand.u32 %s24, 1
        %s161 = smul.addr %s160, 128
        %s162 = scalar_lea.vmem [#allocation2], %s161
        %p163 = pneg %p37
        %p164 = pneg %p34
        %s165 = smul.u32 2, %s16
        %p166 = scmp.lt.s32.totalorder %s165, 3
        %s167 = scalar_select %p166, %s165, 3
        %s168 = smul.addr %s167, 4
        %s169 = smul.addr %s168, 8
        %s170 = scalar_lea.vmem %s1, %s169
        %p171 = pneg %p63
        %p172 = pneg %p60
        %p173 = pneg %p89
        %p174 = pneg %p86
        %s175 = smul.u32 2, %s16
        %p176 = scmp.lt.s32.totalorder %s175, 3
        %s177 = scalar_select %p176, %s175, 3
        %s178 = smul.addr %s177, 2
        %s179 = smul.addr %s178, 4
        %s180 = scalar_lea.vmem %s2, %s179
        %s181 = smul.u32 2, %s16
        %s182 = smul.u32 2, %s16
        %p183 = scmp.lt.s32.totalorder %s182, 3
        %s184 = scalar_select %p183, %s182, 3
        %s185 = smul.addr %s184, 4
        %s186 = smul.addr %s185, 8
        %s187 = scalar_lea.vmem %s1, %s186
        %s188 = smul.u32 2, %s16
        %s189 = smul.u32 2, %s16
        %p190 = scmp.lt.s32.totalorder %s189, 3
        %s191 = scalar_select %p190, %s189, 3
        %s192 = smul.addr %s191, 2
        %s193 = smul.addr %s192, 4
        %s194 = scalar_lea.vmem %s2, %s193
        %s195 = smul.u32 2, %s16
        %v196 = vld [vmem:[%s152] sm:$0xff]
        %v197 = vld [vmem:[%s152 + $0x8] sm:$0xff]
        %v198 = vld [vmem:[%s152 + $0x10] sm:$0xff]
        %v199 = vld [vmem:[%s152 + $0x18] sm:$0xff]
        %v200 = vld [vmem:[%s152 + $0x20] sm:$0xff]
        %v201 = vld [vmem:[%s152 + $0x28] sm:$0xff]
        %v202 = vld [vmem:[%s152 + $0x30] sm:$0xff]
        %v203 = vld [vmem:[%s152 + $0x38] sm:$0xff]
        %v204 = vld [vmem:[%s152 + $0x40] sm:$0xff]
        %v205 = vld [vmem:[%s152 + $0x48] sm:$0xff]
        %v206 = vld [vmem:[%s152 + $0x50] sm:$0xff]
        %v207 = vld [vmem:[%s152 + $0x58] sm:$0xff]
        %v208 = vld [vmem:[%s152 + $0x60] sm:$0xff]
        %v209 = vld [vmem:[%s152 + $0x68] sm:$0xff]
        %v210 = vld [vmem:[%s152 + $0x70] sm:$0xff]
        %v211 = vld [vmem:[%s152 + $0x78] sm:$0xff]
        %v212 = vld [vmem:[%s187] sm:$0xff]
        %v213 = vld [vmem:[%s187 + $0x8] sm:$0xff]
        %v214 = vld [vmem:[%s187 + $0x10] sm:$0xff]
        %v215 = vld [vmem:[%s187 + $0x18] sm:$0xff]
        %v216 = vld [vmem:[%s187 + $0x20] sm:$0xff]
        %v217 = vld [vmem:[%s187 + $0x28] sm:$0xff]
        %v218 = vld [vmem:[%s187 + $0x30] sm:$0xff]
        %v219 = vld [vmem:[%s187 + $0x38] sm:$0xff]
        %vm220 = vcmp.ne.f32.partialorder %v212, 0.0
        %vm221 = vcmp.ne.f32.partialorder %v213, 0.0
        %vm222 = vcmp.ne.f32.partialorder %v214, 0.0
        %vm223 = vcmp.ne.f32.partialorder %v215, 0.0
        %vm224 = vcmp.ne.f32.partialorder %v216, 0.0
        %vm225 = vcmp.ne.f32.partialorder %v217, 0.0
        %vm226 = vcmp.ne.f32.partialorder %v218, 0.0
        %vm227 = vcmp.ne.f32.partialorder %v219, 0.0
        %v228 = vsel %vm220, 1, 0
        %v229 = vsel %vm221, 1, 0
        %v230 = vsel %vm222, 1, 0
        %v231 = vsel %vm223, 1, 0
        %v232 = vsel %vm224, 1, 0
        %v233 = vsel %vm225, 1, 0
        %v234 = vsel %vm226, 1, 0
        %v235 = vsel %vm227, 1, 0
        %236 = vset.pattern.permute.xlu0 0
        %237 = vperm.xlu0 %236, %v228
        %v238 = vpop.permute.xlu0 %237
        %239 = vset.pattern.permute.xlu0 0
        %240 = vperm.xlu0 %239, %v229
        %v241 = vpop.permute.xlu0 %240
        %242 = vset.pattern.permute.xlu0 0
        %243 = vperm.xlu0 %242, %v230
        %v244 = vpop.permute.xlu0 %243
        %245 = vset.pattern.permute.xlu0 0
        %246 = vperm.xlu0 %245, %v231
        %v247 = vpop.permute.xlu0 %246
        %248 = vset.pattern.permute.xlu0 0
        %249 = vperm.xlu0 %248, %v232
        %v250 = vpop.permute.xlu0 %249
        %251 = vset.pattern.permute.xlu0 0
        %252 = vperm.xlu0 %251, %v233
        %v253 = vpop.permute.xlu0 %252
        %254 = vset.pattern.permute.xlu0 0
        %255 = vperm.xlu0 %254, %v234
        %v256 = vpop.permute.xlu0 %255
        %257 = vset.pattern.permute.xlu0 0
        %258 = vperm.xlu0 %257, %v235
        %v259 = vpop.permute.xlu0 %258
        %vm260 = vcmp.eq.s32.totalorder %v238, 1
        %vm261 = vcmp.eq.s32.totalorder %v241, 1
        %vm262 = vcmp.eq.s32.totalorder %v244, 1
        %vm263 = vcmp.eq.s32.totalorder %v247, 1
        %vm264 = vcmp.eq.s32.totalorder %v250, 1
        %vm265 = vcmp.eq.s32.totalorder %v253, 1
        %vm266 = vcmp.eq.s32.totalorder %v256, 1
        %vm267 = vcmp.eq.s32.totalorder %v259, 1
        %v268 = vsel %vm260, %v196, -inf
        %v269 = vsel %vm260, %v197, -inf
        %v270 = vsel %vm261, %v198, -inf
        %v271 = vsel %vm261, %v199, -inf
        %v272 = vsel %vm262, %v200, -inf
        %v273 = vsel %vm262, %v201, -inf
        %v274 = vsel %vm263, %v202, -inf
        %v275 = vsel %vm263, %v203, -inf
        %v276 = vsel %vm264, %v204, -inf
        %v277 = vsel %vm264, %v205, -inf
        %v278 = vsel %vm265, %v206, -inf
        %v279 = vsel %vm265, %v207, -inf
        %v280 = vsel %vm266, %v208, -inf
        %v281 = vsel %vm266, %v209, -inf
        %v282 = vsel %vm267, %v210, -inf
        %v283 = vsel %vm267, %v211, -inf
        %v284 = vsel %vm260, %v196, 0.0
        %v285 = vsel %vm260, %v197, 0.0
        %v286 = vsel %vm261, %v198, 0.0
        %v287 = vsel %vm261, %v199, 0.0
        %v288 = vsel %vm262, %v200, 0.0
        %v289 = vsel %vm262, %v201, 0.0
        %v290 = vsel %vm263, %v202, 0.0
        %v291 = vsel %vm263, %v203, 0.0
        %v292 = vsel %vm264, %v204, 0.0
        %v293 = vsel %vm264, %v205, 0.0
        %v294 = vsel %vm265, %v206, 0.0
        %v295 = vsel %vm265, %v207, 0.0
        %v296 = vsel %vm266, %v208, 0.0
        %v297 = vsel %vm266, %v209, 0.0
        %v298 = vsel %vm267, %v210, 0.0
        %v299 = vsel %vm267, %v211, 0.0
        %v300 = vmax.f32 %v268, %v270
        %v301 = vmax.f32 %v300, %v272
        %v302 = vmax.f32 %v301, %v274
        %v303 = vrot.slane %v302, 4
        %v304 = vmax.f32 %v302, %v303
        %v305 = vrot.slane %v304, 2
        %v306 = vmax.f32 %v304, %v305
        %v307 = vrot.slane %v306, 1
        %v308 = vmax.f32 %v306, %v307
        %v309 = vmax.f32 %v269, %v271
        %v310 = vmax.f32 %v309, %v273
        %v311 = vmax.f32 %v310, %v275
        %v312 = vrot.slane %v311, 4
        %v313 = vmax.f32 %v311, %v312
        %v314 = vrot.slane %v313, 2
        %v315 = vmax.f32 %v313, %v314
        %v316 = vrot.slane %v315, 1
        %v317 = vmax.f32 %v315, %v316
        %v318 = vmax.f32 %v276, %v278
        %v319 = vmax.f32 %v318, %v280
        %v320 = vmax.f32 %v319, %v282
        %v321 = vrot.slane %v320, 4
        %v322 = vmax.f32 %v320, %v321
        %v323 = vrot.slane %v322, 2
        %v324 = vmax.f32 %v322, %v323
        %v325 = vrot.slane %v324, 1
        %v326 = vmax.f32 %v324, %v325
        %v327 = vmax.f32 %v277, %v279
        %v328 = vmax.f32 %v327, %v281
        %v329 = vmax.f32 %v328, %v283
        %v330 = vrot.slane %v329, 4
        %v331 = vmax.f32 %v329, %v330
        %v332 = vrot.slane %v331, 2
        %v333 = vmax.f32 %v331, %v332
        %v334 = vrot.slane %v333, 1
        %v335 = vmax.f32 %v333, %v334
        %vm336 = vcmp.eq.f32.partialorder %v308, -inf
        %vm337 = vcmp.eq.f32.partialorder %v317, -inf
        %vm338 = vcmp.eq.f32.partialorder %v326, -inf
        %vm339 = vcmp.eq.f32.partialorder %v335, -inf
        %v340 = vsel %vm336, 0.0, %v308
        %v341 = vsel %vm337, 0.0, %v317
        %v342 = vsel %vm338, 0.0, %v326
        %v343 = vsel %vm339, 0.0, %v335
        %v344 = vadd.f32 %v284, %v286
        %v345 = vadd.f32 %v344, %v288
        %v346 = vadd.f32 %v345, %v290
        %v347 = vrot.slane %v346, 4
        %v348 = vadd.f32 %v346, %v347
        %v349 = vrot.slane %v348, 2
        %v350 = vadd.f32 %v348, %v349
        %v351 = vrot.slane %v350, 1
        %v352 = vadd.f32 %v350, %v351
        %v353 = vadd.f32 %v285, %v287
        %v354 = vadd.f32 %v353, %v289
        %v355 = vadd.f32 %v354, %v291
        %v356 = vrot.slane %v355, 4
        %v357 = vadd.f32 %v355, %v356
        %v358 = vrot.slane %v357, 2
        %v359 = vadd.f32 %v357, %v358
        %v360 = vrot.slane %v359, 1
        %v361 = vadd.f32 %v359, %v360
        %v362 = vadd.f32 %v292, %v294
        %v363 = vadd.f32 %v362, %v296
        %v364 = vadd.f32 %v363, %v298
        %v365 = vrot.slane %v364, 4
        %v366 = vadd.f32 %v364, %v365
        %v367 = vrot.slane %v366, 2
        %v368 = vadd.f32 %v366, %v367
        %v369 = vrot.slane %v368, 1
        %v370 = vadd.f32 %v368, %v369
        %v371 = vadd.f32 %v293, %v295
        %v372 = vadd.f32 %v371, %v297
        %v373 = vadd.f32 %v372, %v299
        %v374 = vrot.slane %v373, 4
        %v375 = vadd.f32 %v373, %v374
        %v376 = vrot.slane %v375, 2
        %v377 = vadd.f32 %v375, %v376
        %v378 = vrot.slane %v377, 1
        %v379 = vadd.f32 %v377, %v378
        %v380 = vcvt.s32.f32 %v228
        %v381 = vcvt.s32.f32 %v229
        %v382 = vcvt.s32.f32 %v230
        %v383 = vcvt.s32.f32 %v231
        %v384 = vcvt.s32.f32 %v232
        %v385 = vcvt.s32.f32 %v233
        %v386 = vcvt.s32.f32 %v234
        %v387 = vcvt.s32.f32 %v235
        %vm388 = vcmask 7168
        %v389 = vsel %vm388, %v380, 0.0
        %v390 = vsel %vm388, %v381, 0.0
        %v391 = vadd.f32 %v389, %v390
        %v392 = vsel %vm388, %v382, 0.0
        %v393 = vadd.f32 %v391, %v392
        %v394 = vsel %vm388, %v383, 0.0
        %v395 = vadd.f32 %v393, %v394
        %v396 = vrot.slane %v395, 4
        %v397 = vadd.f32 %v395, %v396
        %v398 = vrot.slane %v397, 2
        %v399 = vadd.f32 %v397, %v398
        %v400 = vrot.slane %v399, 1
        %v401 = vadd.f32 %v399, %v400
        %v402 = vsel %vm388, %v384, 0.0
        %v403 = vsel %vm388, %v385, 0.0
        %v404 = vadd.f32 %v402, %v403
        %v405 = vsel %vm388, %v386, 0.0
        %v406 = vadd.f32 %v404, %v405
        %v407 = vsel %vm388, %v387, 0.0
        %v408 = vadd.f32 %v406, %v407
        %v409 = vrot.slane %v408, 4
        %v410 = vadd.f32 %v408, %v409
        %v411 = vrot.slane %v410, 2
        %v412 = vadd.f32 %v410, %v411
        %v413 = vrot.slane %v412, 1
        %v414 = vadd.f32 %v412, %v413
        %v415 = vmax.f32 %v401, 1.0
        %v416 = vmax.f32 %v414, 1.0
        %418 = vset.pattern.permute.xlu0 0
        %419 = vperm.xlu0 %418, %v415
        %v420 = vpop.permute.xlu0 %419
        %423 = vset.pattern.permute.xlu0 0
        %424 = vperm.xlu0 %423, %v416
        %v425 = vpop.permute.xlu0 %424
        %v427 = vrcp.pop %v420
        %v428 = vmul.f32 %v420, %v427
        %v429 = vsub.f32 1.0, %v428
        %v430 = vmul.f32 %v427, %v429
        %v431 = vadd.f32 %v427, %v430
        %vm432 = vweird.f32 %v420
        %vm433 = vweird.f32 %v427
        %vm434 = vmor %vm432, %vm433
        %v435 = vsel %vm434, %v427, %v431
        %v436 = vand.u32 2147483647, %v420
        %vm437 = vcmp.eq.f32.partialorder %v436, 8.507059e+37
        %v438 = vand.u32 %v420, 2147483648
        %v439 = vor.u32 1.1754944e-38, %v438
        %v440 = vsel %vm437, %v439, %v435
        %v441 = vmul.f32 %v352, %v440
        %v442 = vmul.f32 %v361, %v440
        %v443 = vrcp.pop %v425
        %v444 = vmul.f32 %v425, %v443
        %v445 = vsub.f32 1.0, %v444
        %v446 = vmul.f32 %v443, %v445
        %v447 = vadd.f32 %v443, %v446
        %vm448 = vweird.f32 %v425
        %vm449 = vweird.f32 %v443
        %vm450 = vmor %vm448, %vm449
        %v451 = vsel %vm450, %v443, %v447
        %v452 = vand.u32 2147483647, %v425
        %vm453 = vcmp.eq.f32.partialorder %v452, 8.507059e+37
        %v454 = vand.u32 %v425, 2147483648
        %v455 = vor.u32 1.1754944e-38, %v454
        %v456 = vsel %vm453, %v455, %v451
        %v457 = vmul.f32 %v370, %v456
        %v458 = vmul.f32 %v379, %v456
        %v459 = vlaneseq
        %v460 = vshrl.u32 %v459, 7
        %v461 = vadd.s32 %v460, 8
        %v462 = vadd.s32 %v460, 16
        %v463 = vadd.s32 %v460, 24
        %v464 = vmin.f32 %v268, %v270
        %v465 = vmin.f32 %v464, %v272
        %v466 = vmin.f32 %v465, %v274
        %v467 = vrot.slane %v466, 4
        %v468 = vmin.f32 %v466, %v467
        %v469 = vrot.slane %v468, 2
        %v470 = vmin.f32 %v468, %v469
        %v471 = vrot.slane %v470, 1
        %v472 = vmin.f32 %v470, %v471
        %v473 = vmin.f32 %v269, %v271
        %v474 = vmin.f32 %v473, %v273
        %v475 = vmin.f32 %v474, %v275
        %v476 = vrot.slane %v475, 4
        %v477 = vmin.f32 %v475, %v476
        %v478 = vrot.slane %v477, 2
        %v479 = vmin.f32 %v477, %v478
        %v480 = vrot.slane %v479, 1
        %v481 = vmin.f32 %v479, %v480
        %v482 = vmin.f32 %v276, %v278
        %v483 = vmin.f32 %v482, %v280
        %v484 = vmin.f32 %v483, %v282
        %v485 = vrot.slane %v484, 4
        %v486 = vmin.f32 %v484, %v485
        %v487 = vrot.slane %v486, 2
        %v488 = vmin.f32 %v486, %v487
        %v489 = vrot.slane %v488, 1
        %v490 = vmin.f32 %v488, %v489
        %v491 = vmin.f32 %v277, %v279
        %v492 = vmin.f32 %v491, %v281
        %v493 = vmin.f32 %v492, %v283
        %v494 = vrot.slane %v493, 4
        %v495 = vmin.f32 %v493, %v494
        %v496 = vrot.slane %v495, 2
        %v497 = vmin.f32 %v495, %v496
        %v498 = vrot.slane %v497, 1
        %v499 = vmin.f32 %v497, %v498
        %vm500 = vcmp.eq.f32.partialorder %v472, -inf
        %vm501 = vcmp.eq.f32.partialorder %v481, -inf
        %vm502 = vcmp.eq.f32.partialorder %v490, -inf
        %vm503 = vcmp.eq.f32.partialorder %v499, -inf
        %v504 = vsel %vm500, 0.0, %v472
        %v505 = vsel %vm501, 0.0, %v481
        %v506 = vsel %vm502, 0.0, %v490
        %v507 = vsel %vm503, 0.0, %v499
        %v508 = vadd.f32 %v504, 0.0
        %v509 = vadd.f32 %v505, 0.0
        %v510 = vadd.f32 %v506, 0.0
        %v511 = vadd.f32 %v507, 0.0
        %vm512 = vcmp.eq.f32.partialorder %v268, %v472
        %vm513 = vcmp.eq.f32.partialorder %v269, %v481
        %vm514 = vcmp.eq.f32.partialorder %v270, %v472
        %vm515 = vcmp.eq.f32.partialorder %v271, %v481
        %vm516 = vcmp.eq.f32.partialorder %v272, %v472
        %vm517 = vcmp.eq.f32.partialorder %v273, %v481
        %vm518 = vcmp.eq.f32.partialorder %v274, %v472
        %vm519 = vcmp.eq.f32.partialorder %v275, %v481
        %vm520 = vcmp.eq.f32.partialorder %v276, %v490
        %vm521 = vcmp.eq.f32.partialorder %v277, %v499
        %vm522 = vcmp.eq.f32.partialorder %v278, %v490
        %vm523 = vcmp.eq.f32.partialorder %v279, %v499
        %vm524 = vcmp.eq.f32.partialorder %v280, %v490
        %vm525 = vcmp.eq.f32.partialorder %v281, %v499
        %vm526 = vcmp.eq.f32.partialorder %v282, %v490
        %vm527 = vcmp.eq.f32.partialorder %v283, %v499
        %v528 = vsel %vm512, %v460, 32
        %v529 = vsel %vm513, %v460, 32
        %v530 = vsel %vm514, %v461, 32
        %v531 = vsel %vm515, %v461, 32
        %v532 = vsel %vm516, %v462, 32
        %v533 = vsel %vm517, %v462, 32
        %v534 = vsel %vm518, %v463, 32
        %v535 = vsel %vm519, %v463, 32
        %v536 = vsel %vm520, %v460, 32
        %v537 = vsel %vm521, %v460, 32
        %v538 = vsel %vm522, %v461, 32
        %v539 = vsel %vm523, %v461, 32
        %v540 = vsel %vm524, %v462, 32
        %v541 = vsel %vm525, %v462, 32
        %v542 = vsel %vm526, %v463, 32
        %v543 = vsel %vm527, %v463, 32
        %vm544 = vcmp.lt.s32.totalorder %v528, %v530
        %v545 = vsel %vm544, %v528, %v530
        %vm546 = vcmp.lt.s32.totalorder %v545, %v532
        %v547 = vsel %vm546, %v545, %v532
        %vm548 = vcmp.lt.s32.totalorder %v547, %v534
        %v549 = vsel %vm548, %v547, %v534
        %v550 = vrot.slane %v549, 4
        %vm551 = vcmp.lt.s32.totalorder %v549, %v550
        %v552 = vsel %vm551, %v549, %v550
        %v553 = vrot.slane %v552, 2
        %vm554 = vcmp.lt.s32.totalorder %v552, %v553
        %v555 = vsel %vm554, %v552, %v553
        %v556 = vrot.slane %v555, 1
        %vm557 = vcmp.lt.s32.totalorder %v555, %v556
        %v558 = vsel %vm557, %v555, %v556
        %vm559 = vcmp.lt.s32.totalorder %v529, %v531
        %v560 = vsel %vm559, %v529, %v531
        %vm561 = vcmp.lt.s32.totalorder %v560, %v533
        %v562 = vsel %vm561, %v560, %v533
        %vm563 = vcmp.lt.s32.totalorder %v562, %v535
        %v564 = vsel %vm563, %v562, %v535
        %v565 = vrot.slane %v564, 4
        %vm566 = vcmp.lt.s32.totalorder %v564, %v565
        %v567 = vsel %vm566, %v564, %v565
        %v568 = vrot.slane %v567, 2
        %vm569 = vcmp.lt.s32.totalorder %v567, %v568
        %v570 = vsel %vm569, %v567, %v568
        %v571 = vrot.slane %v570, 1
        %vm572 = vcmp.lt.s32.totalorder %v570, %v571
        %v573 = vsel %vm572, %v570, %v571
        %vm574 = vcmp.lt.s32.totalorder %v536, %v538
        %v575 = vsel %vm574, %v536, %v538
        %vm576 = vcmp.lt.s32.totalorder %v575, %v540
        %v577 = vsel %vm576, %v575, %v540
        %vm578 = vcmp.lt.s32.totalorder %v577, %v542
        %v579 = vsel %vm578, %v577, %v542
        %v580 = vrot.slane %v579, 4
        %vm581 = vcmp.lt.s32.totalorder %v579, %v580
        %v582 = vsel %vm581, %v579, %v580
        %v583 = vrot.slane %v582, 2
        %vm584 = vcmp.lt.s32.totalorder %v582, %v583
        %v585 = vsel %vm584, %v582, %v583
        %v586 = vrot.slane %v585, 1
        %vm587 = vcmp.lt.s32.totalorder %v585, %v586
        %v588 = vsel %vm587, %v585, %v586
        %vm589 = vcmp.lt.s32.totalorder %v537, %v539
        %v590 = vsel %vm589, %v537, %v539
        %vm591 = vcmp.lt.s32.totalorder %v590, %v541
        %v592 = vsel %vm591, %v590, %v541
        %vm593 = vcmp.lt.s32.totalorder %v592, %v543
        %v594 = vsel %vm593, %v592, %v543
        %v595 = vrot.slane %v594, 4
        %vm596 = vcmp.lt.s32.totalorder %v594, %v595
        %v597 = vsel %vm596, %v594, %v595
        %v598 = vrot.slane %v597, 2
        %vm599 = vcmp.lt.s32.totalorder %v597, %v598
        %v600 = vsel %vm599, %v597, %v598
        %v601 = vrot.slane %v600, 1
        %vm602 = vcmp.lt.s32.totalorder %v600, %v601
        %v603 = vsel %vm602, %v600, %v601
        %vm604 = vcmp.eq.s32.totalorder %v460, %v558
        %vm605 = vcmp.eq.s32.totalorder %v460, %v573
        %vm606 = vcmp.eq.s32.totalorder %v461, %v558
        %vm607 = vcmp.eq.s32.totalorder %v461, %v573
        %vm608 = vcmp.eq.s32.totalorder %v462, %v558
        %vm609 = vcmp.eq.s32.totalorder %v462, %v573
        %vm610 = vcmp.eq.s32.totalorder %v463, %v558
        %vm611 = vcmp.eq.s32.totalorder %v463, %v573
        %vm612 = vcmp.eq.s32.totalorder %v460, %v588
        %vm613 = vcmp.eq.s32.totalorder %v460, %v603
        %vm614 = vcmp.eq.s32.totalorder %v461, %v588
        %vm615 = vcmp.eq.s32.totalorder %v461, %v603
        %vm616 = vcmp.eq.s32.totalorder %v462, %v588
        %vm617 = vcmp.eq.s32.totalorder %v462, %v603
        %vm618 = vcmp.eq.s32.totalorder %v463, %v588
        %vm619 = vcmp.eq.s32.totalorder %v463, %v603
        %v620 = vsel %vm604, inf, %v268
        %v621 = vsel %vm605, inf, %v269
        %v622 = vsel %vm606, inf, %v270
        %v623 = vsel %vm607, inf, %v271
        %v624 = vsel %vm608, inf, %v272
        %v625 = vsel %vm609, inf, %v273
        %v626 = vsel %vm610, inf, %v274
        %v627 = vsel %vm611, inf, %v275
        %v628 = vsel %vm612, inf, %v276
        %v629 = vsel %vm613, inf, %v277
        %v630 = vsel %vm614, inf, %v278
        %v631 = vsel %vm615, inf, %v279
        %v632 = vsel %vm616, inf, %v280
        %v633 = vsel %vm617, inf, %v281
        %v634 = vsel %vm618, inf, %v282
        %v635 = vsel %vm619, inf, %v283
        %v636 = vmin.f32 %v620, %v622
        %v637 = vmin.f32 %v636, %v624
        %v638 = vmin.f32 %v637, %v626
        %v639 = vrot.slane %v638, 4
        %v640 = vmin.f32 %v638, %v639
        %v641 = vrot.slane %v640, 2
        %v642 = vmin.f32 %v640, %v641
        %v643 = vrot.slane %v642, 1
        %v644 = vmin.f32 %v642, %v643
        %v645 = vmin.f32 %v621, %v623
        %v646 = vmin.f32 %v645, %v625
        %v647 = vmin.f32 %v646, %v627
        %v648 = vrot.slane %v647, 4
        %v649 = vmin.f32 %v647, %v648
        %v650 = vrot.slane %v649, 2
        %v651 = vmin.f32 %v649, %v650
        %v652 = vrot.slane %v651, 1
        %v653 = vmin.f32 %v651, %v652
        %v654 = vmin.f32 %v628, %v630
        %v655 = vmin.f32 %v654, %v632
        %v656 = vmin.f32 %v655, %v634
        %v657 = vrot.slane %v656, 4
        %v658 = vmin.f32 %v656, %v657
        %v659 = vrot.slane %v658, 2
        %v660 = vmin.f32 %v658, %v659
        %v661 = vrot.slane %v660, 1
        %v662 = vmin.f32 %v660, %v661
        %v663 = vmin.f32 %v629, %v631
        %v664 = vmin.f32 %v663, %v633
        %v665 = vmin.f32 %v664, %v635
        %v666 = vrot.slane %v665, 4
        %v667 = vmin.f32 %v665, %v666
        %v668 = vrot.slane %v667, 2
        %v669 = vmin.f32 %v667, %v668
        %v670 = vrot.slane %v669, 1
        %v671 = vmin.f32 %v669, %v670
        %vm672 = vcmp.eq.f32.partialorder %v644, -inf
        %vm673 = vcmp.eq.f32.partialorder %v653, -inf
        %vm674 = vcmp.eq.f32.partialorder %v662, -inf
        %vm675 = vcmp.eq.f32.partialorder %v671, -inf
        %v676 = vsel %vm672, 0.0, %v644
        %v677 = vsel %vm673, 0.0, %v653
        %v678 = vsel %vm674, 0.0, %v662
        %v679 = vsel %vm675, 0.0, %v671
        %v680 = vadd.f32 %v508, %v676
        %v681 = vadd.f32 %v509, %v677
        %v682 = vadd.f32 %v510, %v678
        %v683 = vadd.f32 %v511, %v679
        %vm684 = vcmp.eq.f32.partialorder %v620, %v644
        %vm685 = vcmp.eq.f32.partialorder %v621, %v653
        %vm686 = vcmp.eq.f32.partialorder %v622, %v644
        %vm687 = vcmp.eq.f32.partialorder %v623, %v653
        %vm688 = vcmp.eq.f32.partialorder %v624, %v644
        %vm689 = vcmp.eq.f32.partialorder %v625, %v653
        %vm690 = vcmp.eq.f32.partialorder %v626, %v644
        %vm691 = vcmp.eq.f32.partialorder %v627, %v653
        %vm692 = vcmp.eq.f32.partialorder %v628, %v662
        %vm693 = vcmp.eq.f32.partialorder %v629, %v671
        %vm694 = vcmp.eq.f32.partialorder %v630, %v662
        %vm695 = vcmp.eq.f32.partialorder %v631, %v671
        %vm696 = vcmp.eq.f32.partialorder %v632, %v662
        %vm697 = vcmp.eq.f32.partialorder %v633, %v671
        %vm698 = vcmp.eq.f32.partialorder %v634, %v662
        %vm699 = vcmp.eq.f32.partialorder %v635, %v671
        %v700 = vsel %vm684, %v460, 32
        %v701 = vsel %vm685, %v460, 32
        %v702 = vsel %vm686, %v461, 32
        %v703 = vsel %vm687, %v461, 32
        %v704 = vsel %vm688, %v462, 32
        %v705 = vsel %vm689, %v462, 32
        %v706 = vsel %vm690, %v463, 32
        %v707 = vsel %vm691, %v463, 32
        %v708 = vsel %vm692, %v460, 32
        %v709 = vsel %vm693, %v460, 32
        %v710 = vsel %vm694, %v461, 32
        %v711 = vsel %vm695, %v461, 32
        %v712 = vsel %vm696, %v462, 32
        %v713 = vsel %vm697, %v462, 32
        %v714 = vsel %vm698, %v463, 32
        %v715 = vsel %vm699, %v463, 32
        %vm716 = vcmp.lt.s32.totalorder %v700, %v702
        %v717 = vsel %vm716, %v700, %v702
        %vm718 = vcmp.lt.s32.totalorder %v717, %v704
        %v719 = vsel %vm718, %v717, %v704
        %vm720 = vcmp.lt.s32.totalorder %v719, %v706
        %v721 = vsel %vm720, %v719, %v706
        %v722 = vrot.slane %v721, 4
        %vm723 = vcmp.lt.s32.totalorder %v721, %v722
        %v724 = vsel %vm723, %v721, %v722
        %v725 = vrot.slane %v724, 2
        %vm726 = vcmp.lt.s32.totalorder %v724, %v725
        %v727 = vsel %vm726, %v724, %v725
        %v728 = vrot.slane %v727, 1
        %vm729 = vcmp.lt.s32.totalorder %v727, %v728
        %v730 = vsel %vm729, %v727, %v728
        %vm731 = vcmp.lt.s32.totalorder %v701, %v703
        %v732 = vsel %vm731, %v701, %v703
        %vm733 = vcmp.lt.s32.totalorder %v732, %v705
        %v734 = vsel %vm733, %v732, %v705
        %vm735 = vcmp.lt.s32.totalorder %v734, %v707
        %v736 = vsel %vm735, %v734, %v707
        %v737 = vrot.slane %v736, 4
        %vm738 = vcmp.lt.s32.totalorder %v736, %v737
        %v739 = vsel %vm738, %v736, %v737
        %v740 = vrot.slane %v739, 2
        %vm741 = vcmp.lt.s32.totalorder %v739, %v740
        %v742 = vsel %vm741, %v739, %v740
        %v743 = vrot.slane %v742, 1
        %vm744 = vcmp.lt.s32.totalorder %v742, %v743
        %v745 = vsel %vm744, %v742, %v743
        %vm746 = vcmp.lt.s32.totalorder %v708, %v710
        %v747 = vsel %vm746, %v708, %v710
        %vm748 = vcmp.lt.s32.totalorder %v747, %v712
        %v749 = vsel %vm748, %v747, %v712
        %vm750 = vcmp.lt.s32.totalorder %v749, %v714
        %v751 = vsel %vm750, %v749, %v714
        %v752 = vrot.slane %v751, 4
        %vm753 = vcmp.lt.s32.totalorder %v751, %v752
        %v754 = vsel %vm753, %v751, %v752
        %v755 = vrot.slane %v754, 2
        %vm756 = vcmp.lt.s32.totalorder %v754, %v755
        %v757 = vsel %vm756, %v754, %v755
        %v758 = vrot.slane %v757, 1
        %vm759 = vcmp.lt.s32.totalorder %v757, %v758
        %v760 = vsel %vm759, %v757, %v758
        %vm761 = vcmp.lt.s32.totalorder %v709, %v711
        %v762 = vsel %vm761, %v709, %v711
        %vm763 = vcmp.lt.s32.totalorder %v762, %v713
        %v764 = vsel %vm763, %v762, %v713
        %vm765 = vcmp.lt.s32.totalorder %v764, %v715
        %v766 = vsel %vm765, %v764, %v715
        %v767 = vrot.slane %v766, 4
        %vm768 = vcmp.lt.s32.totalorder %v766, %v767
        %v769 = vsel %vm768, %v766, %v767
        %v770 = vrot.slane %v769, 2
        %vm771 = vcmp.lt.s32.totalorder %v769, %v770
        %v772 = vsel %vm771, %v769, %v770
        %v773 = vrot.slane %v772, 1
        %vm774 = vcmp.lt.s32.totalorder %v772, %v773
        %v775 = vsel %vm774, %v772, %v773
        %vm776 = vcmp.eq.s32.totalorder %v460, %v730
        %vm777 = vcmp.eq.s32.totalorder %v460, %v745
        %vm778 = vcmp.eq.s32.totalorder %v461, %v730
        %vm779 = vcmp.eq.s32.totalorder %v461, %v745
        %vm780 = vcmp.eq.s32.totalorder %v462, %v730
        %vm781 = vcmp.eq.s32.totalorder %v462, %v745
        %vm782 = vcmp.eq.s32.totalorder %v463, %v730
        %vm783 = vcmp.eq.s32.totalorder %v463, %v745
        %vm784 = vcmp.eq.s32.totalorder %v460, %v760
        %vm785 = vcmp.eq.s32.totalorder %v460, %v775
        %vm786 = vcmp.eq.s32.totalorder %v461, %v760
        %vm787 = vcmp.eq.s32.totalorder %v461, %v775
        %vm788 = vcmp.eq.s32.totalorder %v462, %v760
        %vm789 = vcmp.eq.s32.totalorder %v462, %v775
        %vm790 = vcmp.eq.s32.totalorder %v463, %v760
        %vm791 = vcmp.eq.s32.totalorder %v463, %v775
        %v792 = vsel %vm776, inf, %v620
        %v793 = vsel %vm777, inf, %v621
        %v794 = vsel %vm778, inf, %v622
        %v795 = vsel %vm779, inf, %v623
        %v796 = vsel %vm780, inf, %v624
        %v797 = vsel %vm781, inf, %v625
        %v798 = vsel %vm782, inf, %v626
        %v799 = vsel %vm783, inf, %v627
        %v800 = vsel %vm784, inf, %v628
        %v801 = vsel %vm785, inf, %v629
        %v802 = vsel %vm786, inf, %v630
        %v803 = vsel %vm787, inf, %v631
        %v804 = vsel %vm788, inf, %v632
        %v805 = vsel %vm789, inf, %v633
        %v806 = vsel %vm790, inf, %v634
        %v807 = vsel %vm791, inf, %v635
        %v808 = vmin.f32 %v792, %v794
        %v809 = vmin.f32 %v808, %v796
        %v810 = vmin.f32 %v809, %v798
        %v811 = vrot.slane %v810, 4
        %v812 = vmin.f32 %v810, %v811
        %v813 = vrot.slane %v812, 2
        %v814 = vmin.f32 %v812, %v813
        %v815 = vrot.slane %v814, 1
        %v816 = vmin.f32 %v814, %v815
        %v817 = vmin.f32 %v793, %v795
        %v818 = vmin.f32 %v817, %v797
        %v819 = vmin.f32 %v818, %v799
        %v820 = vrot.slane %v819, 4
        %v821 = vmin.f32 %v819, %v820
        %v822 = vrot.slane %v821, 2
        %v823 = vmin.f32 %v821, %v822
        %v824 = vrot.slane %v823, 1
        %v825 = vmin.f32 %v823, %v824
        %v826 = vmin.f32 %v800, %v802
        %v827 = vmin.f32 %v826, %v804
        %v828 = vmin.f32 %v827, %v806
        %v829 = vrot.slane %v828, 4
        %v830 = vmin.f32 %v828, %v829
        %v831 = vrot.slane %v830, 2
        %v832 = vmin.f32 %v830, %v831
        %v833 = vrot.slane %v832, 1
        %v834 = vmin.f32 %v832, %v833
        %v835 = vmin.f32 %v801, %v803
        %v836 = vmin.f32 %v835, %v805
        %v837 = vmin.f32 %v836, %v807
        %v838 = vrot.slane %v837, 4
        %v839 = vmin.f32 %v837, %v838
        %v840 = vrot.slane %v839, 2
        %v841 = vmin.f32 %v839, %v840
        %v842 = vrot.slane %v841, 1
        %v843 = vmin.f32 %v841, %v842
        %vm844 = vcmp.eq.f32.partialorder %v816, -inf
        %vm845 = vcmp.eq.f32.partialorder %v825, -inf
        %vm846 = vcmp.eq.f32.partialorder %v834, -inf
        %vm847 = vcmp.eq.f32.partialorder %v843, -inf
        %v848 = vsel %vm844, 0.0, %v816
        %v849 = vsel %vm845, 0.0, %v825
        %v850 = vsel %vm846, 0.0, %v834
        %v851 = vsel %vm847, 0.0, %v843
        %v852 = vadd.f32 %v680, %v848
        %v853 = vadd.f32 %v681, %v849
        %v854 = vadd.f32 %v682, %v850
        %v855 = vadd.f32 %v683, %v851
        %vm856 = vcmp.eq.f32.partialorder %v792, %v816
        %vm857 = vcmp.eq.f32.partialorder %v793, %v825
        %vm858 = vcmp.eq.f32.partialorder %v794, %v816
        %vm859 = vcmp.eq.f32.partialorder %v795, %v825
        %vm860 = vcmp.eq.f32.partialorder %v796, %v816
        %vm861 = vcmp.eq.f32.partialorder %v797, %v825
        %vm862 = vcmp.eq.f32.partialorder %v798, %v816
        %vm863 = vcmp.eq.f32.partialorder %v799, %v825
        %vm864 = vcmp.eq.f32.partialorder %v800, %v834
        %vm865 = vcmp.eq.f32.partialorder %v801, %v843
        %vm866 = vcmp.eq.f32.partialorder %v802, %v834
        %vm867 = vcmp.eq.f32.partialorder %v803, %v843
        %vm868 = vcmp.eq.f32.partialorder %v804, %v834
        %vm869 = vcmp.eq.f32.partialorder %v805, %v843
        %vm870 = vcmp.eq.f32.partialorder %v806, %v834
        %vm871 = vcmp.eq.f32.partialorder %v807, %v843
        %v872 = vsel %vm856, %v460, 32
        %v873 = vsel %vm857, %v460, 32
        %v874 = vsel %vm858, %v461, 32
        %v875 = vsel %vm859, %v461, 32
        %v876 = vsel %vm860, %v462, 32
        %v877 = vsel %vm861, %v462, 32
        %v878 = vsel %vm862, %v463, 32
        %v879 = vsel %vm863, %v463, 32
        %v880 = vsel %vm864, %v460, 32
        %v881 = vsel %vm865, %v460, 32
        %v882 = vsel %vm866, %v461, 32
        %v883 = vsel %vm867, %v461, 32
        %v884 = vsel %vm868, %v462, 32
        %v885 = vsel %vm869, %v462, 32
        %v886 = vsel %vm870, %v463, 32
        %v887 = vsel %vm871, %v463, 32
        %vm888 = vcmp.lt.s32.totalorder %v872, %v874
        %v889 = vsel %vm888, %v872, %v874
        %vm890 = vcmp.lt.s32.totalorder %v889, %v876
        %v891 = vsel %vm890, %v889, %v876
        %vm892 = vcmp.lt.s32.totalorder %v891, %v878
        %v893 = vsel %vm892, %v891, %v878
        %v894 = vrot.slane %v893, 4
        %vm895 = vcmp.lt.s32.totalorder %v893, %v894
        %v896 = vsel %vm895, %v893, %v894
        %v897 = vrot.slane %v896, 2
        %vm898 = vcmp.lt.s32.totalorder %v896, %v897
        %v899 = vsel %vm898, %v896, %v897
        %v900 = vrot.slane %v899, 1
        %vm901 = vcmp.lt.s32.totalorder %v899, %v900
        %v902 = vsel %vm901, %v899, %v900
        %vm903 = vcmp.lt.s32.totalorder %v873, %v875
        %v904 = vsel %vm903, %v873, %v875
        %vm905 = vcmp.lt.s32.totalorder %v904, %v877
        %v906 = vsel %vm905, %v904, %v877
        %vm907 = vcmp.lt.s32.totalorder %v906, %v879
        %v908 = vsel %vm907, %v906, %v879
        %v909 = vrot.slane %v908, 4
        %vm910 = vcmp.lt.s32.totalorder %v908, %v909
        %v911 = vsel %vm910, %v908, %v909
        %v912 = vrot.slane %v911, 2
        %vm913 = vcmp.lt.s32.totalorder %v911, %v912
        %v914 = vsel %vm913, %v911, %v912
        %v915 = vrot.slane %v914, 1
        %vm916 = vcmp.lt.s32.totalorder %v914, %v915
        %v917 = vsel %vm916, %v914, %v915
        %vm918 = vcmp.lt.s32.totalorder %v880, %v882
        %v919 = vsel %vm918, %v880, %v882
        %vm920 = vcmp.lt.s32.totalorder %v919, %v884
        %v921 = vsel %vm920, %v919, %v884
        %vm922 = vcmp.lt.s32.totalorder %v921, %v886
        %v923 = vsel %vm922, %v921, %v886
        %v924 = vrot.slane %v923, 4
        %vm925 = vcmp.lt.s32.totalorder %v923, %v924
        %v926 = vsel %vm925, %v923, %v924
        %v927 = vrot.slane %v926, 2
        %vm928 = vcmp.lt.s32.totalorder %v926, %v927
        %v929 = vsel %vm928, %v926, %v927
        %v930 = vrot.slane %v929, 1
        %vm931 = vcmp.lt.s32.totalorder %v929, %v930
        %v932 = vsel %vm931, %v929, %v930
        %vm933 = vcmp.lt.s32.totalorder %v881, %v883
        %v934 = vsel %vm933, %v881, %v883
        %vm935 = vcmp.lt.s32.totalorder %v934, %v885
        %v936 = vsel %vm935, %v934, %v885
        %vm937 = vcmp.lt.s32.totalorder %v936, %v887
        %v938 = vsel %vm937, %v936, %v887
        %v939 = vrot.slane %v938, 4
        %vm940 = vcmp.lt.s32.totalorder %v938, %v939
        %v941 = vsel %vm940, %v938, %v939
        %v942 = vrot.slane %v941, 2
        %vm943 = vcmp.lt.s32.totalorder %v941, %v942
        %v944 = vsel %vm943, %v941, %v942
        %v945 = vrot.slane %v944, 1
        %vm946 = vcmp.lt.s32.totalorder %v944, %v945
        %v947 = vsel %vm946, %v944, %v945
        %vm948 = vcmp.eq.s32.totalorder %v460, %v902
        %vm949 = vcmp.eq.s32.totalorder %v460, %v917
        %vm950 = vcmp.eq.s32.totalorder %v461, %v902
        %vm951 = vcmp.eq.s32.totalorder %v461, %v917
        %vm952 = vcmp.eq.s32.totalorder %v462, %v902
        %vm953 = vcmp.eq.s32.totalorder %v462, %v917
        %vm954 = vcmp.eq.s32.totalorder %v463, %v902
        %vm955 = vcmp.eq.s32.totalorder %v463, %v917
        %vm956 = vcmp.eq.s32.totalorder %v460, %v932
        %vm957 = vcmp.eq.s32.totalorder %v460, %v947
        %vm958 = vcmp.eq.s32.totalorder %v461, %v932
        %vm959 = vcmp.eq.s32.totalorder %v461, %v947
        %vm960 = vcmp.eq.s32.totalorder %v462, %v932
        %vm961 = vcmp.eq.s32.totalorder %v462, %v947
        %vm962 = vcmp.eq.s32.totalorder %v463, %v932
        %vm963 = vcmp.eq.s32.totalorder %v463, %v947
        %v964 = vsel %vm948, inf, %v792
        %v965 = vsel %vm949, inf, %v793
        %v966 = vsel %vm950, inf, %v794
        %v967 = vsel %vm951, inf, %v795
        %v968 = vsel %vm952, inf, %v796
        %v969 = vsel %vm953, inf, %v797
        %v970 = vsel %vm954, inf, %v798
        %v971 = vsel %vm955, inf, %v799
        %v972 = vsel %vm956, inf, %v800
        %v973 = vsel %vm957, inf, %v801
        %v974 = vsel %vm958, inf, %v802
        %v975 = vsel %vm959, inf, %v803
        %v976 = vsel %vm960, inf, %v804
        %v977 = vsel %vm961, inf, %v805
        %v978 = vsel %vm962, inf, %v806
        %v979 = vsel %vm963, inf, %v807
        %v980 = vmin.f32 %v964, %v966
        %v981 = vmin.f32 %v980, %v968
        %v982 = vmin.f32 %v981, %v970
        %v983 = vrot.slane %v982, 4
        %v984 = vmin.f32 %v982, %v983
        %v985 = vrot.slane %v984, 2
        %v986 = vmin.f32 %v984, %v985
        %v987 = vrot.slane %v986, 1
        %v988 = vmin.f32 %v986, %v987
        %v989 = vmin.f32 %v965, %v967
        %v990 = vmin.f32 %v989, %v969
        %v991 = vmin.f32 %v990, %v971
        %v992 = vrot.slane %v991, 4
        %v993 = vmin.f32 %v991, %v992
        %v994 = vrot.slane %v993, 2
        %v995 = vmin.f32 %v993, %v994
        %v996 = vrot.slane %v995, 1
        %v997 = vmin.f32 %v995, %v996
        %v998 = vmin.f32 %v972, %v974
        %v999 = vmin.f32 %v998, %v976
        %v1000 = vmin.f32 %v999, %v978
        %v1001 = vrot.slane %v1000, 4
        %v1002 = vmin.f32 %v1000, %v1001
        %v1003 = vrot.slane %v1002, 2
        %v1004 = vmin.f32 %v1002, %v1003
        %v1005 = vrot.slane %v1004, 1
        %v1006 = vmin.f32 %v1004, %v1005
        %v1007 = vmin.f32 %v973, %v975
        %v1008 = vmin.f32 %v1007, %v977
        %v1009 = vmin.f32 %v1008, %v979
        %v1010 = vrot.slane %v1009, 4
        %v1011 = vmin.f32 %v1009, %v1010
        %v1012 = vrot.slane %v1011, 2
        %v1013 = vmin.f32 %v1011, %v1012
        %v1014 = vrot.slane %v1013, 1
        %v1015 = vmin.f32 %v1013, %v1014
        %vm1016 = vcmp.eq.f32.partialorder %v988, -inf
        %vm1017 = vcmp.eq.f32.partialorder %v997, -inf
        %vm1018 = vcmp.eq.f32.partialorder %v1006, -inf
        %vm1019 = vcmp.eq.f32.partialorder %v1015, -inf
        %v1020 = vsel %vm1016, 0.0, %v988
        %v1021 = vsel %vm1017, 0.0, %v997
        %v1022 = vsel %vm1018, 0.0, %v1006
        %v1023 = vsel %vm1019, 0.0, %v1015
        %v1024 = vadd.f32 %v852, %v1020
        %v1025 = vadd.f32 %v853, %v1021
        %v1026 = vadd.f32 %v854, %v1022
        %v1027 = vadd.f32 %v855, %v1023
        %vm1028 = vcmp.eq.f32.partialorder %v964, %v988
        %vm1029 = vcmp.eq.f32.partialorder %v965, %v997
        %vm1030 = vcmp.eq.f32.partialorder %v966, %v988
        %vm1031 = vcmp.eq.f32.partialorder %v967, %v997
        %vm1032 = vcmp.eq.f32.partialorder %v968, %v988
        %vm1033 = vcmp.eq.f32.partialorder %v969, %v997
        %vm1034 = vcmp.eq.f32.partialorder %v970, %v988
        %vm1035 = vcmp.eq.f32.partialorder %v971, %v997
        %vm1036 = vcmp.eq.f32.partialorder %v972, %v1006
        %vm1037 = vcmp.eq.f32.partialorder %v973, %v1015
        %vm1038 = vcmp.eq.f32.partialorder %v974, %v1006
        %vm1039 = vcmp.eq.f32.partialorder %v975, %v1015
        %vm1040 = vcmp.eq.f32.partialorder %v976, %v1006
        %vm1041 = vcmp.eq.f32.partialorder %v977, %v1015
        %vm1042 = vcmp.eq.f32.partialorder %v978, %v1006
        %vm1043 = vcmp.eq.f32.partialorder %v979, %v1015
        %v1044 = vsel %vm1028, %v460, 32
        %v1045 = vsel %vm1029, %v460, 32
        %v1046 = vsel %vm1030, %v461, 32
        %v1047 = vsel %vm1031, %v461, 32
        %v1048 = vsel %vm1032, %v462, 32
        %v1049 = vsel %vm1033, %v462, 32
        %v1050 = vsel %vm1034, %v463, 32
        %v1051 = vsel %vm1035, %v463, 32
        %v1052 = vsel %vm1036, %v460, 32
        %v1053 = vsel %vm1037, %v460, 32
        %v1054 = vsel %vm1038, %v461, 32
        %v1055 = vsel %vm1039, %v461, 32
        %v1056 = vsel %vm1040, %v462, 32
        %v1057 = vsel %vm1041, %v462, 32
        %v1058 = vsel %vm1042, %v463, 32
        %v1059 = vsel %vm1043, %v463, 32
        %vm1060 = vcmp.lt.s32.totalorder %v1044, %v1046
        %v1061 = vsel %vm1060, %v1044, %v1046
        %vm1062 = vcmp.lt.s32.totalorder %v1061, %v1048
        %v1063 = vsel %vm1062, %v1061, %v1048
        %vm1064 = vcmp.lt.s32.totalorder %v1063, %v1050
        %v1065 = vsel %vm1064, %v1063, %v1050
        %v1066 = vrot.slane %v1065, 4
        %vm1067 = vcmp.lt.s32.totalorder %v1065, %v1066
        %v1068 = vsel %vm1067, %v1065, %v1066
        %v1069 = vrot.slane %v1068, 2
        %vm1070 = vcmp.lt.s32.totalorder %v1068, %v1069
        %v1071 = vsel %vm1070, %v1068, %v1069
        %v1072 = vrot.slane %v1071, 1
        %vm1073 = vcmp.lt.s32.totalorder %v1071, %v1072
        %v1074 = vsel %vm1073, %v1071, %v1072
        %vm1075 = vcmp.lt.s32.totalorder %v1045, %v1047
        %v1076 = vsel %vm1075, %v1045, %v1047
        %vm1077 = vcmp.lt.s32.totalorder %v1076, %v1049
        %v1078 = vsel %vm1077, %v1076, %v1049
        %vm1079 = vcmp.lt.s32.totalorder %v1078, %v1051
        %v1080 = vsel %vm1079, %v1078, %v1051
        %v1081 = vrot.slane %v1080, 4
        %vm1082 = vcmp.lt.s32.totalorder %v1080, %v1081
        %v1083 = vsel %vm1082, %v1080, %v1081
        %v1084 = vrot.slane %v1083, 2
        %vm1085 = vcmp.lt.s32.totalorder %v1083, %v1084
        %v1086 = vsel %vm1085, %v1083, %v1084
        %v1087 = vrot.slane %v1086, 1
        %vm1088 = vcmp.lt.s32.totalorder %v1086, %v1087
        %v1089 = vsel %vm1088, %v1086, %v1087
        %vm1090 = vcmp.lt.s32.totalorder %v1052, %v1054
        %v1091 = vsel %vm1090, %v1052, %v1054
        %vm1092 = vcmp.lt.s32.totalorder %v1091, %v1056
        %v1093 = vsel %vm1092, %v1091, %v1056
        %vm1094 = vcmp.lt.s32.totalorder %v1093, %v1058
        %v1095 = vsel %vm1094, %v1093, %v1058
        %v1096 = vrot.slane %v1095, 4
        %vm1097 = vcmp.lt.s32.totalorder %v1095, %v1096
        %v1098 = vsel %vm1097, %v1095, %v1096
        %v1099 = vrot.slane %v1098, 2
        %vm1100 = vcmp.lt.s32.totalorder %v1098, %v1099
        %v1101 = vsel %vm1100, %v1098, %v1099
        %v1102 = vrot.slane %v1101, 1
        %vm1103 = vcmp.lt.s32.totalorder %v1101, %v1102
        %v1104 = vsel %vm1103, %v1101, %v1102
        %vm1105 = vcmp.lt.s32.totalorder %v1053, %v1055
        %v1106 = vsel %vm1105, %v1053, %v1055
        %vm1107 = vcmp.lt.s32.totalorder %v1106, %v1057
        %v1108 = vsel %vm1107, %v1106, %v1057
        %vm1109 = vcmp.lt.s32.totalorder %v1108, %v1059
        %v1110 = vsel %vm1109, %v1108, %v1059
        %v1111 = vrot.slane %v1110, 4
        %vm1112 = vcmp.lt.s32.totalorder %v1110, %v1111
        %v1113 = vsel %vm1112, %v1110, %v1111
        %v1114 = vrot.slane %v1113, 2
        %vm1115 = vcmp.lt.s32.totalorder %v1113, %v1114
        %v1116 = vsel %vm1115, %v1113, %v1114
        %v1117 = vrot.slane %v1116, 1
        %vm1118 = vcmp.lt.s32.totalorder %v1116, %v1117
        %v1119 = vsel %vm1118, %v1116, %v1117
        %vm1120 = vcmp.eq.s32.totalorder %v460, %v1074
        %vm1121 = vcmp.eq.s32.totalorder %v460, %v1089
        %vm1122 = vcmp.eq.s32.totalorder %v461, %v1074
        %vm1123 = vcmp.eq.s32.totalorder %v461, %v1089
        %vm1124 = vcmp.eq.s32.totalorder %v462, %v1074
        %vm1125 = vcmp.eq.s32.totalorder %v462, %v1089
        %vm1126 = vcmp.eq.s32.totalorder %v463, %v1074
        %vm1127 = vcmp.eq.s32.totalorder %v463, %v1089
        %vm1128 = vcmp.eq.s32.totalorder %v460, %v1104
        %vm1129 = vcmp.eq.s32.totalorder %v460, %v1119
        %vm1130 = vcmp.eq.s32.totalorder %v461, %v1104
        %vm1131 = vcmp.eq.s32.totalorder %v461, %v1119
        %vm1132 = vcmp.eq.s32.totalorder %v462, %v1104
        %vm1133 = vcmp.eq.s32.totalorder %v462, %v1119
        %vm1134 = vcmp.eq.s32.totalorder %v463, %v1104
        %vm1135 = vcmp.eq.s32.totalorder %v463, %v1119
        %v1136 = vsel %vm1120, inf, %v964
        %v1137 = vsel %vm1121, inf, %v965
        %v1138 = vsel %vm1122, inf, %v966
        %v1139 = vsel %vm1123, inf, %v967
        %v1140 = vsel %vm1124, inf, %v968
        %v1141 = vsel %vm1125, inf, %v969
        %v1142 = vsel %vm1126, inf, %v970
        %v1143 = vsel %vm1127, inf, %v971
        %v1144 = vsel %vm1128, inf, %v972
        %v1145 = vsel %vm1129, inf, %v973
        %v1146 = vsel %vm1130, inf, %v974
        %v1147 = vsel %vm1131, inf, %v975
        %v1148 = vsel %vm1132, inf, %v976
        %v1149 = vsel %vm1133, inf, %v977
        %v1150 = vsel %vm1134, inf, %v978
        %v1151 = vsel %vm1135, inf, %v979
        %v1152 = vmin.f32 %v1136, %v1138
        %v1153 = vmin.f32 %v1152, %v1140
        %v1154 = vmin.f32 %v1153, %v1142
        %v1155 = vrot.slane %v1154, 4
        %v1156 = vmin.f32 %v1154, %v1155
        %v1157 = vrot.slane %v1156, 2
        %v1158 = vmin.f32 %v1156, %v1157
        %v1159 = vrot.slane %v1158, 1
        %v1160 = vmin.f32 %v1158, %v1159
        %v1161 = vmin.f32 %v1137, %v1139
        %v1162 = vmin.f32 %v1161, %v1141
        %v1163 = vmin.f32 %v1162, %v1143
        %v1164 = vrot.slane %v1163, 4
        %v1165 = vmin.f32 %v1163, %v1164
        %v1166 = vrot.slane %v1165, 2
        %v1167 = vmin.f32 %v1165, %v1166
        %v1168 = vrot.slane %v1167, 1
        %v1169 = vmin.f32 %v1167, %v1168
        %v1170 = vmin.f32 %v1144, %v1146
        %v1171 = vmin.f32 %v1170, %v1148
        %v1172 = vmin.f32 %v1171, %v1150
        %v1173 = vrot.slane %v1172, 4
        %v1174 = vmin.f32 %v1172, %v1173
        %v1175 = vrot.slane %v1174, 2
        %v1176 = vmin.f32 %v1174, %v1175
        %v1177 = vrot.slane %v1176, 1
        %v1178 = vmin.f32 %v1176, %v1177
        %v1179 = vmin.f32 %v1145, %v1147
        %v1180 = vmin.f32 %v1179, %v1149
        %v1181 = vmin.f32 %v1180, %v1151
        %v1182 = vrot.slane %v1181, 4
        %v1183 = vmin.f32 %v1181, %v1182
        %v1184 = vrot.slane %v1183, 2
        %v1185 = vmin.f32 %v1183, %v1184
        %v1186 = vrot.slane %v1185, 1
        %v1187 = vmin.f32 %v1185, %v1186
        %vm1188 = vcmp.eq.f32.partialorder %v1160, -inf
        %vm1189 = vcmp.eq.f32.partialorder %v1169, -inf
        %vm1190 = vcmp.eq.f32.partialorder %v1178, -inf
        %vm1191 = vcmp.eq.f32.partialorder %v1187, -inf
        %v1192 = vsel %vm1188, 0.0, %v1160
        %v1193 = vsel %vm1189, 0.0, %v1169
        %v1194 = vsel %vm1190, 0.0, %v1178
        %v1195 = vsel %vm1191, 0.0, %v1187
        %v1196 = vadd.f32 %v1024, %v1192
        %v1197 = vadd.f32 %v1025, %v1193
        %v1198 = vadd.f32 %v1026, %v1194
        %v1199 = vadd.f32 %v1027, %v1195
        %vm1200 = vcmp.eq.f32.partialorder %v1136, %v1160
        %vm1201 = vcmp.eq.f32.partialorder %v1137, %v1169
        %vm1202 = vcmp.eq.f32.partialorder %v1138, %v1160
        %vm1203 = vcmp.eq.f32.partialorder %v1139, %v1169
        %vm1204 = vcmp.eq.f32.partialorder %v1140, %v1160
        %vm1205 = vcmp.eq.f32.partialorder %v1141, %v1169
        %vm1206 = vcmp.eq.f32.partialorder %v1142, %v1160
        %vm1207 = vcmp.eq.f32.partialorder %v1143, %v1169
        %vm1208 = vcmp.eq.f32.partialorder %v1144, %v1178
        %vm1209 = vcmp.eq.f32.partialorder %v1145, %v1187
        %vm1210 = vcmp.eq.f32.partialorder %v1146, %v1178
        %vm1211 = vcmp.eq.f32.partialorder %v1147, %v1187
        %vm1212 = vcmp.eq.f32.partialorder %v1148, %v1178
        %vm1213 = vcmp.eq.f32.partialorder %v1149, %v1187
        %vm1214 = vcmp.eq.f32.partialorder %v1150, %v1178
        %vm1215 = vcmp.eq.f32.partialorder %v1151, %v1187
        %v1216 = vsel %vm1200, %v460, 32
        %v1217 = vsel %vm1201, %v460, 32
        %v1218 = vsel %vm1202, %v461, 32
        %v1219 = vsel %vm1203, %v461, 32
        %v1220 = vsel %vm1204, %v462, 32
        %v1221 = vsel %vm1205, %v462, 32
        %v1222 = vsel %vm1206, %v463, 32
        %v1223 = vsel %vm1207, %v463, 32
        %v1224 = vsel %vm1208, %v460, 32
        %v1225 = vsel %vm1209, %v460, 32
        %v1226 = vsel %vm1210, %v461, 32
        %v1227 = vsel %vm1211, %v461, 32
        %v1228 = vsel %vm1212, %v462, 32
        %v1229 = vsel %vm1213, %v462, 32
        %v1230 = vsel %vm1214, %v463, 32
        %v1231 = vsel %vm1215, %v463, 32
        %vm1232 = vcmp.lt.s32.totalorder %v1216, %v1218
        %v1233 = vsel %vm1232, %v1216, %v1218
        %vm1234 = vcmp.lt.s32.totalorder %v1233, %v1220
        %v1235 = vsel %vm1234, %v1233, %v1220
        %vm1236 = vcmp.lt.s32.totalorder %v1235, %v1222
        %v1237 = vsel %vm1236, %v1235, %v1222
        %v1238 = vrot.slane %v1237, 4
        %vm1239 = vcmp.lt.s32.totalorder %v1237, %v1238
        %v1240 = vsel %vm1239, %v1237, %v1238
        %v1241 = vrot.slane %v1240, 2
        %vm1242 = vcmp.lt.s32.totalorder %v1240, %v1241
        %v1243 = vsel %vm1242, %v1240, %v1241
        %v1244 = vrot.slane %v1243, 1
        %vm1245 = vcmp.lt.s32.totalorder %v1243, %v1244
        %v1246 = vsel %vm1245, %v1243, %v1244
        %vm1247 = vcmp.lt.s32.totalorder %v1217, %v1219
        %v1248 = vsel %vm1247, %v1217, %v1219
        %vm1249 = vcmp.lt.s32.totalorder %v1248, %v1221
        %v1250 = vsel %vm1249, %v1248, %v1221
        %vm1251 = vcmp.lt.s32.totalorder %v1250, %v1223
        %v1252 = vsel %vm1251, %v1250, %v1223
        %v1253 = vrot.slane %v1252, 4
        %vm1254 = vcmp.lt.s32.totalorder %v1252, %v1253
        %v1255 = vsel %vm1254, %v1252, %v1253
        %v1256 = vrot.slane %v1255, 2
        %vm1257 = vcmp.lt.s32.totalorder %v1255, %v1256
        %v1258 = vsel %vm1257, %v1255, %v1256
        %v1259 = vrot.slane %v1258, 1
        %vm1260 = vcmp.lt.s32.totalorder %v1258, %v1259
        %v1261 = vsel %vm1260, %v1258, %v1259
        %vm1262 = vcmp.lt.s32.totalorder %v1224, %v1226
        %v1263 = vsel %vm1262, %v1224, %v1226
        %vm1264 = vcmp.lt.s32.totalorder %v1263, %v1228
        %v1265 = vsel %vm1264, %v1263, %v1228
        %vm1266 = vcmp.lt.s32.totalorder %v1265, %v1230
        %v1267 = vsel %vm1266, %v1265, %v1230
        %v1268 = vrot.slane %v1267, 4
        %vm1269 = vcmp.lt.s32.totalorder %v1267, %v1268
        %v1270 = vsel %vm1269, %v1267, %v1268
        %v1271 = vrot.slane %v1270, 2
        %vm1272 = vcmp.lt.s32.totalorder %v1270, %v1271
        %v1273 = vsel %vm1272, %v1270, %v1271
        %v1274 = vrot.slane %v1273, 1
        %vm1275 = vcmp.lt.s32.totalorder %v1273, %v1274
        %v1276 = vsel %vm1275, %v1273, %v1274
        %vm1277 = vcmp.lt.s32.totalorder %v1225, %v1227
        %v1278 = vsel %vm1277, %v1225, %v1227
        %vm1279 = vcmp.lt.s32.totalorder %v1278, %v1229
        %v1280 = vsel %vm1279, %v1278, %v1229
        %vm1281 = vcmp.lt.s32.totalorder %v1280, %v1231
        %v1282 = vsel %vm1281, %v1280, %v1231
        %v1283 = vrot.slane %v1282, 4
        %vm1284 = vcmp.lt.s32.totalorder %v1282, %v1283
        %v1285 = vsel %vm1284, %v1282, %v1283
        %v1286 = vrot.slane %v1285, 2
        %vm1287 = vcmp.lt.s32.totalorder %v1285, %v1286
        %v1288 = vsel %vm1287, %v1285, %v1286
        %v1289 = vrot.slane %v1288, 1
        %vm1290 = vcmp.lt.s32.totalorder %v1288, %v1289
        %v1291 = vsel %vm1290, %v1288, %v1289
        %vm1292 = vcmp.eq.s32.totalorder %v460, %v1246
        %vm1293 = vcmp.eq.s32.totalorder %v460, %v1261
        %vm1294 = vcmp.eq.s32.totalorder %v461, %v1246
        %vm1295 = vcmp.eq.s32.totalorder %v461, %v1261
        %vm1296 = vcmp.eq.s32.totalorder %v462, %v1246
        %vm1297 = vcmp.eq.s32.totalorder %v462, %v1261
        %vm1298 = vcmp.eq.s32.totalorder %v463, %v1246
        %vm1299 = vcmp.eq.s32.totalorder %v463, %v1261
        %vm1300 = vcmp.eq.s32.totalorder %v460, %v1276
        %vm1301 = vcmp.eq.s32.totalorder %v460, %v1291
        %vm1302 = vcmp.eq.s32.totalorder %v461, %v1276
        %vm1303 = vcmp.eq.s32.totalorder %v461, %v1291
        %vm1304 = vcmp.eq.s32.totalorder %v462, %v1276
        %vm1305 = vcmp.eq.s32.totalorder %v462, %v1291
        %vm1306 = vcmp.eq.s32.totalorder %v463, %v1276
        %vm1307 = vcmp.eq.s32.totalorder %v463, %v1291
        %v1308 = vsel %vm1292, inf, %v1136
        %v1309 = vsel %vm1293, inf, %v1137
        %v1310 = vsel %vm1294, inf, %v1138
        %v1311 = vsel %vm1295, inf, %v1139
        %v1312 = vsel %vm1296, inf, %v1140
        %v1313 = vsel %vm1297, inf, %v1141
        %v1314 = vsel %vm1298, inf, %v1142
        %v1315 = vsel %vm1299, inf, %v1143
        %v1316 = vsel %vm1300, inf, %v1144
        %v1317 = vsel %vm1301, inf, %v1145
        %v1318 = vsel %vm1302, inf, %v1146
        %v1319 = vsel %vm1303, inf, %v1147
        %v1320 = vsel %vm1304, inf, %v1148
        %v1321 = vsel %vm1305, inf, %v1149
        %v1322 = vsel %vm1306, inf, %v1150
        %v1323 = vsel %vm1307, inf, %v1151
        %v1324 = vmin.f32 %v1308, %v1310
        %v1325 = vmin.f32 %v1324, %v1312
        %v1326 = vmin.f32 %v1325, %v1314
        %v1327 = vrot.slane %v1326, 4
        %v1328 = vmin.f32 %v1326, %v1327
        %v1329 = vrot.slane %v1328, 2
        %v1330 = vmin.f32 %v1328, %v1329
        %v1331 = vrot.slane %v1330, 1
        %v1332 = vmin.f32 %v1330, %v1331
        %v1333 = vmin.f32 %v1309, %v1311
        %v1334 = vmin.f32 %v1333, %v1313
        %v1335 = vmin.f32 %v1334, %v1315
        %v1336 = vrot.slane %v1335, 4
        %v1337 = vmin.f32 %v1335, %v1336
        %v1338 = vrot.slane %v1337, 2
        %v1339 = vmin.f32 %v1337, %v1338
        %v1340 = vrot.slane %v1339, 1
        %v1341 = vmin.f32 %v1339, %v1340
        %v1342 = vmin.f32 %v1316, %v1318
        %v1343 = vmin.f32 %v1342, %v1320
        %v1344 = vmin.f32 %v1343, %v1322
        %v1345 = vrot.slane %v1344, 4
        %v1346 = vmin.f32 %v1344, %v1345
        %v1347 = vrot.slane %v1346, 2
        %v1348 = vmin.f32 %v1346, %v1347
        %v1349 = vrot.slane %v1348, 1
        %v1350 = vmin.f32 %v1348, %v1349
        %v1351 = vmin.f32 %v1317, %v1319
        %v1352 = vmin.f32 %v1351, %v1321
        %v1353 = vmin.f32 %v1352, %v1323
        %v1354 = vrot.slane %v1353, 4
        %v1355 = vmin.f32 %v1353, %v1354
        %v1356 = vrot.slane %v1355, 2
        %v1357 = vmin.f32 %v1355, %v1356
        %v1358 = vrot.slane %v1357, 1
        %v1359 = vmin.f32 %v1357, %v1358
        %vm1360 = vcmp.eq.f32.partialorder %v1332, -inf
        %vm1361 = vcmp.eq.f32.partialorder %v1341, -inf
        %vm1362 = vcmp.eq.f32.partialorder %v1350, -inf
        %vm1363 = vcmp.eq.f32.partialorder %v1359, -inf
        %v1364 = vsel %vm1360, 0.0, %v1332
        %v1365 = vsel %vm1361, 0.0, %v1341
        %v1366 = vsel %vm1362, 0.0, %v1350
        %v1367 = vsel %vm1363, 0.0, %v1359
        %v1368 = vadd.f32 %v1196, %v1364
        %v1369 = vadd.f32 %v1197, %v1365
        %v1370 = vadd.f32 %v1198, %v1366
        %v1371 = vadd.f32 %v1199, %v1367
        %vm1372 = vcmp.eq.f32.partialorder %v1308, %v1332
        %vm1373 = vcmp.eq.f32.partialorder %v1309, %v1341
        %vm1374 = vcmp.eq.f32.partialorder %v1310, %v1332
        %vm1375 = vcmp.eq.f32.partialorder %v1311, %v1341
        %vm1376 = vcmp.eq.f32.partialorder %v1312, %v1332
        %vm1377 = vcmp.eq.f32.partialorder %v1313, %v1341
        %vm1378 = vcmp.eq.f32.partialorder %v1314, %v1332
        %vm1379 = vcmp.eq.f32.partialorder %v1315, %v1341
        %vm1380 = vcmp.eq.f32.partialorder %v1316, %v1350
        %vm1381 = vcmp.eq.f32.partialorder %v1317, %v1359
        %vm1382 = vcmp.eq.f32.partialorder %v1318, %v1350
        %vm1383 = vcmp.eq.f32.partialorder %v1319, %v1359
        %vm1384 = vcmp.eq.f32.partialorder %v1320, %v1350
        %vm1385 = vcmp.eq.f32.partialorder %v1321, %v1359
        %vm1386 = vcmp.eq.f32.partialorder %v1322, %v1350
        %vm1387 = vcmp.eq.f32.partialorder %v1323, %v1359
        %v1388 = vsel %vm1372, %v460, 32
        %v1389 = vsel %vm1373, %v460, 32
        %v1390 = vsel %vm1374, %v461, 32
        %v1391 = vsel %vm1375, %v461, 32
        %v1392 = vsel %vm1376, %v462, 32
        %v1393 = vsel %vm1377, %v462, 32
        %v1394 = vsel %vm1378, %v463, 32
        %v1395 = vsel %vm1379, %v463, 32
        %v1396 = vsel %vm1380, %v460, 32
        %v1397 = vsel %vm1381, %v460, 32
        %v1398 = vsel %vm1382, %v461, 32
        %v1399 = vsel %vm1383, %v461, 32
        %v1400 = vsel %vm1384, %v462, 32
        %v1401 = vsel %vm1385, %v462, 32
        %v1402 = vsel %vm1386, %v463, 32
        %v1403 = vsel %vm1387, %v463, 32
        %vm1404 = vcmp.lt.s32.totalorder %v1388, %v1390
        %v1405 = vsel %vm1404, %v1388, %v1390
        %vm1406 = vcmp.lt.s32.totalorder %v1405, %v1392
        %v1407 = vsel %vm1406, %v1405, %v1392
        %vm1408 = vcmp.lt.s32.totalorder %v1407, %v1394
        %v1409 = vsel %vm1408, %v1407, %v1394
        %v1410 = vrot.slane %v1409, 4
        %vm1411 = vcmp.lt.s32.totalorder %v1409, %v1410
        %v1412 = vsel %vm1411, %v1409, %v1410
        %v1413 = vrot.slane %v1412, 2
        %vm1414 = vcmp.lt.s32.totalorder %v1412, %v1413
        %v1415 = vsel %vm1414, %v1412, %v1413
        %v1416 = vrot.slane %v1415, 1
        %vm1417 = vcmp.lt.s32.totalorder %v1415, %v1416
        %v1418 = vsel %vm1417, %v1415, %v1416
        %vm1419 = vcmp.lt.s32.totalorder %v1389, %v1391
        %v1420 = vsel %vm1419, %v1389, %v1391
        %vm1421 = vcmp.lt.s32.totalorder %v1420, %v1393
        %v1422 = vsel %vm1421, %v1420, %v1393
        %vm1423 = vcmp.lt.s32.totalorder %v1422, %v1395
        %v1424 = vsel %vm1423, %v1422, %v1395
        %v1425 = vrot.slane %v1424, 4
        %vm1426 = vcmp.lt.s32.totalorder %v1424, %v1425
        %v1427 = vsel %vm1426, %v1424, %v1425
        %v1428 = vrot.slane %v1427, 2
        %vm1429 = vcmp.lt.s32.totalorder %v1427, %v1428
        %v1430 = vsel %vm1429, %v1427, %v1428
        %v1431 = vrot.slane %v1430, 1
        %vm1432 = vcmp.lt.s32.totalorder %v1430, %v1431
        %v1433 = vsel %vm1432, %v1430, %v1431
        %vm1434 = vcmp.lt.s32.totalorder %v1396, %v1398
        %v1435 = vsel %vm1434, %v1396, %v1398
        %vm1436 = vcmp.lt.s32.totalorder %v1435, %v1400
        %v1437 = vsel %vm1436, %v1435, %v1400
        %vm1438 = vcmp.lt.s32.totalorder %v1437, %v1402
        %v1439 = vsel %vm1438, %v1437, %v1402
        %v1440 = vrot.slane %v1439, 4
        %vm1441 = vcmp.lt.s32.totalorder %v1439, %v1440
        %v1442 = vsel %vm1441, %v1439, %v1440
        %v1443 = vrot.slane %v1442, 2
        %vm1444 = vcmp.lt.s32.totalorder %v1442, %v1443
        %v1445 = vsel %vm1444, %v1442, %v1443
        %v1446 = vrot.slane %v1445, 1
        %vm1447 = vcmp.lt.s32.totalorder %v1445, %v1446
        %v1448 = vsel %vm1447, %v1445, %v1446
        %vm1449 = vcmp.lt.s32.totalorder %v1397, %v1399
        %v1450 = vsel %vm1449, %v1397, %v1399
        %vm1451 = vcmp.lt.s32.totalorder %v1450, %v1401
        %v1452 = vsel %vm1451, %v1450, %v1401
        %vm1453 = vcmp.lt.s32.totalorder %v1452, %v1403
        %v1454 = vsel %vm1453, %v1452, %v1403
        %v1455 = vrot.slane %v1454, 4
        %vm1456 = vcmp.lt.s32.totalorder %v1454, %v1455
        %v1457 = vsel %vm1456, %v1454, %v1455
        %v1458 = vrot.slane %v1457, 2
        %vm1459 = vcmp.lt.s32.totalorder %v1457, %v1458
        %v1460 = vsel %vm1459, %v1457, %v1458
        %v1461 = vrot.slane %v1460, 1
        %vm1462 = vcmp.lt.s32.totalorder %v1460, %v1461
        %v1463 = vsel %vm1462, %v1460, %v1461
        %vm1464 = vcmp.eq.s32.totalorder %v460, %v1418
        %vm1465 = vcmp.eq.s32.totalorder %v460, %v1433
        %vm1466 = vcmp.eq.s32.totalorder %v461, %v1418
        %vm1467 = vcmp.eq.s32.totalorder %v461, %v1433
        %vm1468 = vcmp.eq.s32.totalorder %v462, %v1418
        %vm1469 = vcmp.eq.s32.totalorder %v462, %v1433
        %vm1470 = vcmp.eq.s32.totalorder %v463, %v1418
        %vm1471 = vcmp.eq.s32.totalorder %v463, %v1433
        %vm1472 = vcmp.eq.s32.totalorder %v460, %v1448
        %vm1473 = vcmp.eq.s32.totalorder %v460, %v1463
        %vm1474 = vcmp.eq.s32.totalorder %v461, %v1448
        %vm1475 = vcmp.eq.s32.totalorder %v461, %v1463
        %vm1476 = vcmp.eq.s32.totalorder %v462, %v1448
        %vm1477 = vcmp.eq.s32.totalorder %v462, %v1463
        %vm1478 = vcmp.eq.s32.totalorder %v463, %v1448
        %vm1479 = vcmp.eq.s32.totalorder %v463, %v1463
        %v1480 = vsel %vm1464, inf, %v1308
        %v1481 = vsel %vm1465, inf, %v1309
        %v1482 = vsel %vm1466, inf, %v1310
        %v1483 = vsel %vm1467, inf, %v1311
        %v1484 = vsel %vm1468, inf, %v1312
        %v1485 = vsel %vm1469, inf, %v1313
        %v1486 = vsel %vm1470, inf, %v1314
        %v1487 = vsel %vm1471, inf, %v1315
        %v1488 = vsel %vm1472, inf, %v1316
        %v1489 = vsel %vm1473, inf, %v1317
        %v1490 = vsel %vm1474, inf, %v1318
        %v1491 = vsel %vm1475, inf, %v1319
        %v1492 = vsel %vm1476, inf, %v1320
        %v1493 = vsel %vm1477, inf, %v1321
        %v1494 = vsel %vm1478, inf, %v1322
        %v1495 = vsel %vm1479, inf, %v1323
        %v1496 = vmin.f32 %v1480, %v1482
        %v1497 = vmin.f32 %v1496, %v1484
        %v1498 = vmin.f32 %v1497, %v1486
        %v1499 = vrot.slane %v1498, 4
        %v1500 = vmin.f32 %v1498, %v1499
        %v1501 = vrot.slane %v1500, 2
        %v1502 = vmin.f32 %v1500, %v1501
        %v1503 = vrot.slane %v1502, 1
        %v1504 = vmin.f32 %v1502, %v1503
        %v1505 = vmin.f32 %v1481, %v1483
        %v1506 = vmin.f32 %v1505, %v1485
        %v1507 = vmin.f32 %v1506, %v1487
        %v1508 = vrot.slane %v1507, 4
        %v1509 = vmin.f32 %v1507, %v1508
        %v1510 = vrot.slane %v1509, 2
        %v1511 = vmin.f32 %v1509, %v1510
        %v1512 = vrot.slane %v1511, 1
        %v1513 = vmin.f32 %v1511, %v1512
        %v1514 = vmin.f32 %v1488, %v1490
        %v1515 = vmin.f32 %v1514, %v1492
        %v1516 = vmin.f32 %v1515, %v1494
        %v1517 = vrot.slane %v1516, 4
        %v1518 = vmin.f32 %v1516, %v1517
        %v1519 = vrot.slane %v1518, 2
        %v1520 = vmin.f32 %v1518, %v1519
        %v1521 = vrot.slane %v1520, 1
        %v1522 = vmin.f32 %v1520, %v1521
        %v1523 = vmin.f32 %v1489, %v1491
        %v1524 = vmin.f32 %v1523, %v1493
        %v1525 = vmin.f32 %v1524, %v1495
        %v1526 = vrot.slane %v1525, 4
        %v1527 = vmin.f32 %v1525, %v1526
        %v1528 = vrot.slane %v1527, 2
        %v1529 = vmin.f32 %v1527, %v1528
        %v1530 = vrot.slane %v1529, 1
        %v1531 = vmin.f32 %v1529, %v1530
        %vm1532 = vcmp.eq.f32.partialorder %v1504, -inf
        %vm1533 = vcmp.eq.f32.partialorder %v1513, -inf
        %vm1534 = vcmp.eq.f32.partialorder %v1522, -inf
        %vm1535 = vcmp.eq.f32.partialorder %v1531, -inf
        %v1536 = vsel %vm1532, 0.0, %v1504
        %v1537 = vsel %vm1533, 0.0, %v1513
        %v1538 = vsel %vm1534, 0.0, %v1522
        %v1539 = vsel %vm1535, 0.0, %v1531
        %v1540 = vadd.f32 %v1368, %v1536
        %v1541 = vadd.f32 %v1369, %v1537
        %v1542 = vadd.f32 %v1370, %v1538
        %v1543 = vadd.f32 %v1371, %v1539
        %vm1544 = vcmp.eq.f32.partialorder %v1480, %v1504
        %vm1545 = vcmp.eq.f32.partialorder %v1481, %v1513
        %vm1546 = vcmp.eq.f32.partialorder %v1482, %v1504
        %vm1547 = vcmp.eq.f32.partialorder %v1483, %v1513
        %vm1548 = vcmp.eq.f32.partialorder %v1484, %v1504
        %vm1549 = vcmp.eq.f32.partialorder %v1485, %v1513
        %vm1550 = vcmp.eq.f32.partialorder %v1486, %v1504
        %vm1551 = vcmp.eq.f32.partialorder %v1487, %v1513
        %vm1552 = vcmp.eq.f32.partialorder %v1488, %v1522
        %vm1553 = vcmp.eq.f32.partialorder %v1489, %v1531
        %vm1554 = vcmp.eq.f32.partialorder %v1490, %v1522
        %vm1555 = vcmp.eq.f32.partialorder %v1491, %v1531
        %vm1556 = vcmp.eq.f32.partialorder %v1492, %v1522
        %vm1557 = vcmp.eq.f32.partialorder %v1493, %v1531
        %vm1558 = vcmp.eq.f32.partialorder %v1494, %v1522
        %vm1559 = vcmp.eq.f32.partialorder %v1495, %v1531
        %v1560 = vsel %vm1544, %v460, 32
        %v1561 = vsel %vm1545, %v460, 32
        %v1562 = vsel %vm1546, %v461, 32
        %v1563 = vsel %vm1547, %v461, 32
        %v1564 = vsel %vm1548, %v462, 32
        %v1565 = vsel %vm1549, %v462, 32
        %v1566 = vsel %vm1550, %v463, 32
        %v1567 = vsel %vm1551, %v463, 32
        %v1568 = vsel %vm1552, %v460, 32
        %v1569 = vsel %vm1553, %v460, 32
        %v1570 = vsel %vm1554, %v461, 32
        %v1571 = vsel %vm1555, %v461, 32
        %v1572 = vsel %vm1556, %v462, 32
        %v1573 = vsel %vm1557, %v462, 32
        %v1574 = vsel %vm1558, %v463, 32
        %v1575 = vsel %vm1559, %v463, 32
        %vm1576 = vcmp.lt.s32.totalorder %v1560, %v1562
        %v1577 = vsel %vm1576, %v1560, %v1562
        %vm1578 = vcmp.lt.s32.totalorder %v1577, %v1564
        %v1579 = vsel %vm1578, %v1577, %v1564
        %vm1580 = vcmp.lt.s32.totalorder %v1579, %v1566
        %v1581 = vsel %vm1580, %v1579, %v1566
        %v1582 = vrot.slane %v1581, 4
        %vm1583 = vcmp.lt.s32.totalorder %v1581, %v1582
        %v1584 = vsel %vm1583, %v1581, %v1582
        %v1585 = vrot.slane %v1584, 2
        %vm1586 = vcmp.lt.s32.totalorder %v1584, %v1585
        %v1587 = vsel %vm1586, %v1584, %v1585
        %v1588 = vrot.slane %v1587, 1
        %vm1589 = vcmp.lt.s32.totalorder %v1587, %v1588
        %v1590 = vsel %vm1589, %v1587, %v1588
        %vm1591 = vcmp.lt.s32.totalorder %v1561, %v1563
        %v1592 = vsel %vm1591, %v1561, %v1563
        %vm1593 = vcmp.lt.s32.totalorder %v1592, %v1565
        %v1594 = vsel %vm1593, %v1592, %v1565
        %vm1595 = vcmp.lt.s32.totalorder %v1594, %v1567
        %v1596 = vsel %vm1595, %v1594, %v1567
        %v1597 = vrot.slane %v1596, 4
        %vm1598 = vcmp.lt.s32.totalorder %v1596, %v1597
        %v1599 = vsel %vm1598, %v1596, %v1597
        %v1600 = vrot.slane %v1599, 2
        %vm1601 = vcmp.lt.s32.totalorder %v1599, %v1600
        %v1602 = vsel %vm1601, %v1599, %v1600
        %v1603 = vrot.slane %v1602, 1
        %vm1604 = vcmp.lt.s32.totalorder %v1602, %v1603
        %v1605 = vsel %vm1604, %v1602, %v1603
        %vm1606 = vcmp.lt.s32.totalorder %v1568, %v1570
        %v1607 = vsel %vm1606, %v1568, %v1570
        %vm1608 = vcmp.lt.s32.totalorder %v1607, %v1572
        %v1609 = vsel %vm1608, %v1607, %v1572
        %vm1610 = vcmp.lt.s32.totalorder %v1609, %v1574
        %v1611 = vsel %vm1610, %v1609, %v1574
        %v1612 = vrot.slane %v1611, 4
        %vm1613 = vcmp.lt.s32.totalorder %v1611, %v1612
        %v1614 = vsel %vm1613, %v1611, %v1612
        %v1615 = vrot.slane %v1614, 2
        %vm1616 = vcmp.lt.s32.totalorder %v1614, %v1615
        %v1617 = vsel %vm1616, %v1614, %v1615
        %v1618 = vrot.slane %v1617, 1
        %vm1619 = vcmp.lt.s32.totalorder %v1617, %v1618
        %v1620 = vsel %vm1619, %v1617, %v1618
        %vm1621 = vcmp.lt.s32.totalorder %v1569, %v1571
        %v1622 = vsel %vm1621, %v1569, %v1571
        %vm1623 = vcmp.lt.s32.totalorder %v1622, %v1573
        %v1624 = vsel %vm1623, %v1622, %v1573
        %vm1625 = vcmp.lt.s32.totalorder %v1624, %v1575
        %v1626 = vsel %vm1625, %v1624, %v1575
        %v1627 = vrot.slane %v1626, 4
        %vm1628 = vcmp.lt.s32.totalorder %v1626, %v1627
        %v1629 = vsel %vm1628, %v1626, %v1627
        %v1630 = vrot.slane %v1629, 2
        %vm1631 = vcmp.lt.s32.totalorder %v1629, %v1630
        %v1632 = vsel %vm1631, %v1629, %v1630
        %v1633 = vrot.slane %v1632, 1
        %vm1634 = vcmp.lt.s32.totalorder %v1632, %v1633
        %v1635 = vsel %vm1634, %v1632, %v1633
        %vm1636 = vcmp.eq.s32.totalorder %v460, %v1590
        %vm1637 = vcmp.eq.s32.totalorder %v460, %v1605
        %vm1638 = vcmp.eq.s32.totalorder %v461, %v1590
        %vm1639 = vcmp.eq.s32.totalorder %v461, %v1605
        %vm1640 = vcmp.eq.s32.totalorder %v462, %v1590
        %vm1641 = vcmp.eq.s32.totalorder %v462, %v1605
        %vm1642 = vcmp.eq.s32.totalorder %v463, %v1590
        %vm1643 = vcmp.eq.s32.totalorder %v463, %v1605
        %vm1644 = vcmp.eq.s32.totalorder %v460, %v1620
        %vm1645 = vcmp.eq.s32.totalorder %v460, %v1635
        %vm1646 = vcmp.eq.s32.totalorder %v461, %v1620
        %vm1647 = vcmp.eq.s32.totalorder %v461, %v1635
        %vm1648 = vcmp.eq.s32.totalorder %v462, %v1620
        %vm1649 = vcmp.eq.s32.totalorder %v462, %v1635
        %vm1650 = vcmp.eq.s32.totalorder %v463, %v1620
        %vm1651 = vcmp.eq.s32.totalorder %v463, %v1635
        %v1652 = vsel %vm1636, inf, %v1480
        %v1653 = vsel %vm1637, inf, %v1481
        %v1654 = vsel %vm1638, inf, %v1482
        %v1655 = vsel %vm1639, inf, %v1483
        %v1656 = vsel %vm1640, inf, %v1484
        %v1657 = vsel %vm1641, inf, %v1485
        %v1658 = vsel %vm1642, inf, %v1486
        %v1659 = vsel %vm1643, inf, %v1487
        %v1660 = vsel %vm1644, inf, %v1488
        %v1661 = vsel %vm1645, inf, %v1489
        %v1662 = vsel %vm1646, inf, %v1490
        %v1663 = vsel %vm1647, inf, %v1491
        %v1664 = vsel %vm1648, inf, %v1492
        %v1665 = vsel %vm1649, inf, %v1493
        %v1666 = vsel %vm1650, inf, %v1494
        %v1667 = vsel %vm1651, inf, %v1495
        %v1668 = vmin.f32 %v1652, %v1654
        %v1669 = vmin.f32 %v1668, %v1656
        %v1670 = vmin.f32 %v1669, %v1658
        %v1671 = vrot.slane %v1670, 4
        %v1672 = vmin.f32 %v1670, %v1671
        %v1673 = vrot.slane %v1672, 2
        %v1674 = vmin.f32 %v1672, %v1673
        %v1675 = vrot.slane %v1674, 1
        %v1676 = vmin.f32 %v1674, %v1675
        %v1677 = vmin.f32 %v1653, %v1655
        %v1678 = vmin.f32 %v1677, %v1657
        %v1679 = vmin.f32 %v1678, %v1659
        %v1680 = vrot.slane %v1679, 4
        %v1681 = vmin.f32 %v1679, %v1680
        %v1682 = vrot.slane %v1681, 2
        %v1683 = vmin.f32 %v1681, %v1682
        %v1684 = vrot.slane %v1683, 1
        %v1685 = vmin.f32 %v1683, %v1684
        %v1686 = vmin.f32 %v1660, %v1662
        %v1687 = vmin.f32 %v1686, %v1664
        %v1688 = vmin.f32 %v1687, %v1666
        %v1689 = vrot.slane %v1688, 4
        %v1690 = vmin.f32 %v1688, %v1689
        %v1691 = vrot.slane %v1690, 2
        %v1692 = vmin.f32 %v1690, %v1691
        %v1693 = vrot.slane %v1692, 1
        %v1694 = vmin.f32 %v1692, %v1693
        %v1695 = vmin.f32 %v1661, %v1663
        %v1696 = vmin.f32 %v1695, %v1665
        %v1697 = vmin.f32 %v1696, %v1667
        %v1698 = vrot.slane %v1697, 4
        %v1699 = vmin.f32 %v1697, %v1698
        %v1700 = vrot.slane %v1699, 2
        %v1701 = vmin.f32 %v1699, %v1700
        %v1702 = vrot.slane %v1701, 1
        %v1703 = vmin.f32 %v1701, %v1702
        %vm1704 = vcmp.eq.f32.partialorder %v1676, -inf
        %vm1705 = vcmp.eq.f32.partialorder %v1685, -inf
        %vm1706 = vcmp.eq.f32.partialorder %v1694, -inf
        %vm1707 = vcmp.eq.f32.partialorder %v1703, -inf
        %v1708 = vsel %vm1704, 0.0, %v1676
        %v1709 = vsel %vm1705, 0.0, %v1685
        %v1710 = vsel %vm1706, 0.0, %v1694
        %v1711 = vsel %vm1707, 0.0, %v1703
        %v1712 = vadd.f32 %v1540, %v1708
        %v1713 = vadd.f32 %v1541, %v1709
        %v1714 = vadd.f32 %v1542, %v1710
        %v1715 = vadd.f32 %v1543, %v1711
        %vm1716 = vcmp.eq.f32.partialorder %v1652, %v1676
        %vm1717 = vcmp.eq.f32.partialorder %v1653, %v1685
        %vm1718 = vcmp.eq.f32.partialorder %v1654, %v1676
        %vm1719 = vcmp.eq.f32.partialorder %v1655, %v1685
        %vm1720 = vcmp.eq.f32.partialorder %v1656, %v1676
        %vm1721 = vcmp.eq.f32.partialorder %v1657, %v1685
        %vm1722 = vcmp.eq.f32.partialorder %v1658, %v1676
        %vm1723 = vcmp.eq.f32.partialorder %v1659, %v1685
        %vm1724 = vcmp.eq.f32.partialorder %v1660, %v1694
        %vm1725 = vcmp.eq.f32.partialorder %v1661, %v1703
        %vm1726 = vcmp.eq.f32.partialorder %v1662, %v1694
        %vm1727 = vcmp.eq.f32.partialorder %v1663, %v1703
        %vm1728 = vcmp.eq.f32.partialorder %v1664, %v1694
        %vm1729 = vcmp.eq.f32.partialorder %v1665, %v1703
        %vm1730 = vcmp.eq.f32.partialorder %v1666, %v1694
        %vm1731 = vcmp.eq.f32.partialorder %v1667, %v1703
        %v1732 = vsel %vm1716, %v460, 32
        %v1733 = vsel %vm1717, %v460, 32
        %v1734 = vsel %vm1718, %v461, 32
        %v1735 = vsel %vm1719, %v461, 32
        %v1736 = vsel %vm1720, %v462, 32
        %v1737 = vsel %vm1721, %v462, 32
        %v1738 = vsel %vm1722, %v463, 32
        %v1739 = vsel %vm1723, %v463, 32
        %v1740 = vsel %vm1724, %v460, 32
        %v1741 = vsel %vm1725, %v460, 32
        %v1742 = vsel %vm1726, %v461, 32
        %v1743 = vsel %vm1727, %v461, 32
        %v1744 = vsel %vm1728, %v462, 32
        %v1745 = vsel %vm1729, %v462, 32
        %v1746 = vsel %vm1730, %v463, 32
        %v1747 = vsel %vm1731, %v463, 32
        %vm1748 = vcmp.lt.s32.totalorder %v1732, %v1734
        %v1749 = vsel %vm1748, %v1732, %v1734
        %vm1750 = vcmp.lt.s32.totalorder %v1749, %v1736
        %v1751 = vsel %vm1750, %v1749, %v1736
        %vm1752 = vcmp.lt.s32.totalorder %v1751, %v1738
        %v1753 = vsel %vm1752, %v1751, %v1738
        %v1754 = vrot.slane %v1753, 4
        %vm1755 = vcmp.lt.s32.totalorder %v1753, %v1754
        %v1756 = vsel %vm1755, %v1753, %v1754
        %v1757 = vrot.slane %v1756, 2
        %vm1758 = vcmp.lt.s32.totalorder %v1756, %v1757
        %v1759 = vsel %vm1758, %v1756, %v1757
        %v1760 = vrot.slane %v1759, 1
        %vm1761 = vcmp.lt.s32.totalorder %v1759, %v1760
        %v1762 = vsel %vm1761, %v1759, %v1760
        %vm1763 = vcmp.lt.s32.totalorder %v1733, %v1735
        %v1764 = vsel %vm1763, %v1733, %v1735
        %vm1765 = vcmp.lt.s32.totalorder %v1764, %v1737
        %v1766 = vsel %vm1765, %v1764, %v1737
        %vm1767 = vcmp.lt.s32.totalorder %v1766, %v1739
        %v1768 = vsel %vm1767, %v1766, %v1739
        %v1769 = vrot.slane %v1768, 4
        %vm1770 = vcmp.lt.s32.totalorder %v1768, %v1769
        %v1771 = vsel %vm1770, %v1768, %v1769
        %v1772 = vrot.slane %v1771, 2
        %vm1773 = vcmp.lt.s32.totalorder %v1771, %v1772
        %v1774 = vsel %vm1773, %v1771, %v1772
        %v1775 = vrot.slane %v1774, 1
        %vm1776 = vcmp.lt.s32.totalorder %v1774, %v1775
        %v1777 = vsel %vm1776, %v1774, %v1775
        %vm1778 = vcmp.lt.s32.totalorder %v1740, %v1742
        %v1779 = vsel %vm1778, %v1740, %v1742
        %vm1780 = vcmp.lt.s32.totalorder %v1779, %v1744
        %v1781 = vsel %vm1780, %v1779, %v1744
        %vm1782 = vcmp.lt.s32.totalorder %v1781, %v1746
        %v1783 = vsel %vm1782, %v1781, %v1746
        %v1784 = vrot.slane %v1783, 4
        %vm1785 = vcmp.lt.s32.totalorder %v1783, %v1784
        %v1786 = vsel %vm1785, %v1783, %v1784
        %v1787 = vrot.slane %v1786, 2
        %vm1788 = vcmp.lt.s32.totalorder %v1786, %v1787
        %v1789 = vsel %vm1788, %v1786, %v1787
        %v1790 = vrot.slane %v1789, 1
        %vm1791 = vcmp.lt.s32.totalorder %v1789, %v1790
        %v1792 = vsel %vm1791, %v1789, %v1790
        %vm1793 = vcmp.lt.s32.totalorder %v1741, %v1743
        %v1794 = vsel %vm1793, %v1741, %v1743
        %vm1795 = vcmp.lt.s32.totalorder %v1794, %v1745
        %v1796 = vsel %vm1795, %v1794, %v1745
        %vm1797 = vcmp.lt.s32.totalorder %v1796, %v1747
        %v1798 = vsel %vm1797, %v1796, %v1747
        %v1799 = vrot.slane %v1798, 4
        %vm1800 = vcmp.lt.s32.totalorder %v1798, %v1799
        %v1801 = vsel %vm1800, %v1798, %v1799
        %v1802 = vrot.slane %v1801, 2
        %vm1803 = vcmp.lt.s32.totalorder %v1801, %v1802
        %v1804 = vsel %vm1803, %v1801, %v1802
        %v1805 = vrot.slane %v1804, 1
        %vm1806 = vcmp.lt.s32.totalorder %v1804, %v1805
        %v1807 = vsel %vm1806, %v1804, %v1805
        %vm1808 = vcmp.eq.s32.totalorder %v460, %v1762
        %vm1809 = vcmp.eq.s32.totalorder %v460, %v1777
        %vm1810 = vcmp.eq.s32.totalorder %v461, %v1762
        %vm1811 = vcmp.eq.s32.totalorder %v461, %v1777
        %vm1812 = vcmp.eq.s32.totalorder %v462, %v1762
        %vm1813 = vcmp.eq.s32.totalorder %v462, %v1777
        %vm1814 = vcmp.eq.s32.totalorder %v463, %v1762
        %vm1815 = vcmp.eq.s32.totalorder %v463, %v1777
        %vm1816 = vcmp.eq.s32.totalorder %v460, %v1792
        %vm1817 = vcmp.eq.s32.totalorder %v460, %v1807
        %vm1818 = vcmp.eq.s32.totalorder %v461, %v1792
        %vm1819 = vcmp.eq.s32.totalorder %v461, %v1807
        %vm1820 = vcmp.eq.s32.totalorder %v462, %v1792
        %vm1821 = vcmp.eq.s32.totalorder %v462, %v1807
        %vm1822 = vcmp.eq.s32.totalorder %v463, %v1792
        %vm1823 = vcmp.eq.s32.totalorder %v463, %v1807
        %v1824 = vsel %vm1808, inf, %v1652
        %v1825 = vsel %vm1809, inf, %v1653
        %v1826 = vsel %vm1810, inf, %v1654
        %v1827 = vsel %vm1811, inf, %v1655
        %v1828 = vsel %vm1812, inf, %v1656
        %v1829 = vsel %vm1813, inf, %v1657
        %v1830 = vsel %vm1814, inf, %v1658
        %v1831 = vsel %vm1815, inf, %v1659
        %v1832 = vsel %vm1816, inf, %v1660
        %v1833 = vsel %vm1817, inf, %v1661
        %v1834 = vsel %vm1818, inf, %v1662
        %v1835 = vsel %vm1819, inf, %v1663
        %v1836 = vsel %vm1820, inf, %v1664
        %v1837 = vsel %vm1821, inf, %v1665
        %v1838 = vsel %vm1822, inf, %v1666
        %v1839 = vsel %vm1823, inf, %v1667
        %v1840 = vmin.f32 %v1824, %v1826
        %v1841 = vmin.f32 %v1840, %v1828
        %v1842 = vmin.f32 %v1841, %v1830
        %v1843 = vrot.slane %v1842, 4
        %v1844 = vmin.f32 %v1842, %v1843
        %v1845 = vrot.slane %v1844, 2
        %v1846 = vmin.f32 %v1844, %v1845
        %v1847 = vrot.slane %v1846, 1
        %v1848 = vmin.f32 %v1846, %v1847
        %v1849 = vmin.f32 %v1825, %v1827
        %v1850 = vmin.f32 %v1849, %v1829
        %v1851 = vmin.f32 %v1850, %v1831
        %v1852 = vrot.slane %v1851, 4
        %v1853 = vmin.f32 %v1851, %v1852
        %v1854 = vrot.slane %v1853, 2
        %v1855 = vmin.f32 %v1853, %v1854
        %v1856 = vrot.slane %v1855, 1
        %v1857 = vmin.f32 %v1855, %v1856
        %v1858 = vmin.f32 %v1832, %v1834
        %v1859 = vmin.f32 %v1858, %v1836
        %v1860 = vmin.f32 %v1859, %v1838
        %v1861 = vrot.slane %v1860, 4
        %v1862 = vmin.f32 %v1860, %v1861
        %v1863 = vrot.slane %v1862, 2
        %v1864 = vmin.f32 %v1862, %v1863
        %v1865 = vrot.slane %v1864, 1
        %v1866 = vmin.f32 %v1864, %v1865
        %v1867 = vmin.f32 %v1833, %v1835
        %v1868 = vmin.f32 %v1867, %v1837
        %v1869 = vmin.f32 %v1868, %v1839
        %v1870 = vrot.slane %v1869, 4
        %v1871 = vmin.f32 %v1869, %v1870
        %v1872 = vrot.slane %v1871, 2
        %v1873 = vmin.f32 %v1871, %v1872
        %v1874 = vrot.slane %v1873, 1
        %v1875 = vmin.f32 %v1873, %v1874
        %vm1876 = vcmp.eq.f32.partialorder %v1848, -inf
        %vm1877 = vcmp.eq.f32.partialorder %v1857, -inf
        %vm1878 = vcmp.eq.f32.partialorder %v1866, -inf
        %vm1879 = vcmp.eq.f32.partialorder %v1875, -inf
        %v1880 = vsel %vm1876, 0.0, %v1848
        %v1881 = vsel %vm1877, 0.0, %v1857
        %v1882 = vsel %vm1878, 0.0, %v1866
        %v1883 = vsel %vm1879, 0.0, %v1875
        %v1884 = vadd.f32 %v1712, %v1880
        %v1885 = vadd.f32 %v1713, %v1881
        %v1886 = vadd.f32 %v1714, %v1882
        %v1887 = vadd.f32 %v1715, %v1883
        %vm1888 = vcmp.eq.f32.partialorder %v1824, %v1848
        %vm1889 = vcmp.eq.f32.partialorder %v1825, %v1857
        %vm1890 = vcmp.eq.f32.partialorder %v1826, %v1848
        %vm1891 = vcmp.eq.f32.partialorder %v1827, %v1857
        %vm1892 = vcmp.eq.f32.partialorder %v1828, %v1848
        %vm1893 = vcmp.eq.f32.partialorder %v1829, %v1857
        %vm1894 = vcmp.eq.f32.partialorder %v1830, %v1848
        %vm1895 = vcmp.eq.f32.partialorder %v1831, %v1857
        %vm1896 = vcmp.eq.f32.partialorder %v1832, %v1866
        %vm1897 = vcmp.eq.f32.partialorder %v1833, %v1875
        %vm1898 = vcmp.eq.f32.partialorder %v1834, %v1866
        %vm1899 = vcmp.eq.f32.partialorder %v1835, %v1875
        %vm1900 = vcmp.eq.f32.partialorder %v1836, %v1866
        %vm1901 = vcmp.eq.f32.partialorder %v1837, %v1875
        %vm1902 = vcmp.eq.f32.partialorder %v1838, %v1866
        %vm1903 = vcmp.eq.f32.partialorder %v1839, %v1875
        %v1904 = vsel %vm1888, %v460, 32
        %v1905 = vsel %vm1889, %v460, 32
        %v1906 = vsel %vm1890, %v461, 32
        %v1907 = vsel %vm1891, %v461, 32
        %v1908 = vsel %vm1892, %v462, 32
        %v1909 = vsel %vm1893, %v462, 32
        %v1910 = vsel %vm1894, %v463, 32
        %v1911 = vsel %vm1895, %v463, 32
        %v1912 = vsel %vm1896, %v460, 32
        %v1913 = vsel %vm1897, %v460, 32
        %v1914 = vsel %vm1898, %v461, 32
        %v1915 = vsel %vm1899, %v461, 32
        %v1916 = vsel %vm1900, %v462, 32
        %v1917 = vsel %vm1901, %v462, 32
        %v1918 = vsel %vm1902, %v463, 32
        %v1919 = vsel %vm1903, %v463, 32
        %vm1920 = vcmp.lt.s32.totalorder %v1904, %v1906
        %v1921 = vsel %vm1920, %v1904, %v1906
        %vm1922 = vcmp.lt.s32.totalorder %v1921, %v1908
        %v1923 = vsel %vm1922, %v1921, %v1908
        %vm1924 = vcmp.lt.s32.totalorder %v1923, %v1910
        %v1925 = vsel %vm1924, %v1923, %v1910
        %v1926 = vrot.slane %v1925, 4
        %vm1927 = vcmp.lt.s32.totalorder %v1925, %v1926
        %v1928 = vsel %vm1927, %v1925, %v1926
        %v1929 = vrot.slane %v1928, 2
        %vm1930 = vcmp.lt.s32.totalorder %v1928, %v1929
        %v1931 = vsel %vm1930, %v1928, %v1929
        %v1932 = vrot.slane %v1931, 1
        %vm1933 = vcmp.lt.s32.totalorder %v1931, %v1932
        %v1934 = vsel %vm1933, %v1931, %v1932
        %vm1935 = vcmp.lt.s32.totalorder %v1905, %v1907
        %v1936 = vsel %vm1935, %v1905, %v1907
        %vm1937 = vcmp.lt.s32.totalorder %v1936, %v1909
        %v1938 = vsel %vm1937, %v1936, %v1909
        %vm1939 = vcmp.lt.s32.totalorder %v1938, %v1911
        %v1940 = vsel %vm1939, %v1938, %v1911
        %v1941 = vrot.slane %v1940, 4
        %vm1942 = vcmp.lt.s32.totalorder %v1940, %v1941
        %v1943 = vsel %vm1942, %v1940, %v1941
        %v1944 = vrot.slane %v1943, 2
        %vm1945 = vcmp.lt.s32.totalorder %v1943, %v1944
        %v1946 = vsel %vm1945, %v1943, %v1944
        %v1947 = vrot.slane %v1946, 1
        %vm1948 = vcmp.lt.s32.totalorder %v1946, %v1947
        %v1949 = vsel %vm1948, %v1946, %v1947
        %vm1950 = vcmp.lt.s32.totalorder %v1912, %v1914
        %v1951 = vsel %vm1950, %v1912, %v1914
        %vm1952 = vcmp.lt.s32.totalorder %v1951, %v1916
        %v1953 = vsel %vm1952, %v1951, %v1916
        %vm1954 = vcmp.lt.s32.totalorder %v1953, %v1918
        %v1955 = vsel %vm1954, %v1953, %v1918
        %v1956 = vrot.slane %v1955, 4
        %vm1957 = vcmp.lt.s32.totalorder %v1955, %v1956
        %v1958 = vsel %vm1957, %v1955, %v1956
        %v1959 = vrot.slane %v1958, 2
        %vm1960 = vcmp.lt.s32.totalorder %v1958, %v1959
        %v1961 = vsel %vm1960, %v1958, %v1959
        %v1962 = vrot.slane %v1961, 1
        %vm1963 = vcmp.lt.s32.totalorder %v1961, %v1962
        %v1964 = vsel %vm1963, %v1961, %v1962
        %vm1965 = vcmp.lt.s32.totalorder %v1913, %v1915
        %v1966 = vsel %vm1965, %v1913, %v1915
        %vm1967 = vcmp.lt.s32.totalorder %v1966, %v1917
        %v1968 = vsel %vm1967, %v1966, %v1917
        %vm1969 = vcmp.lt.s32.totalorder %v1968, %v1919
        %v1970 = vsel %vm1969, %v1968, %v1919
        %v1971 = vrot.slane %v1970, 4
        %vm1972 = vcmp.lt.s32.totalorder %v1970, %v1971
        %v1973 = vsel %vm1972, %v1970, %v1971
        %v1974 = vrot.slane %v1973, 2
        %vm1975 = vcmp.lt.s32.totalorder %v1973, %v1974
        %v1976 = vsel %vm1975, %v1973, %v1974
        %v1977 = vrot.slane %v1976, 1
        %vm1978 = vcmp.lt.s32.totalorder %v1976, %v1977
        %v1979 = vsel %vm1978, %v1976, %v1977
        %vm1980 = vcmp.eq.s32.totalorder %v460, %v1934
        %vm1981 = vcmp.eq.s32.totalorder %v460, %v1949
        %vm1982 = vcmp.eq.s32.totalorder %v461, %v1934
        %vm1983 = vcmp.eq.s32.totalorder %v461, %v1949
        %vm1984 = vcmp.eq.s32.totalorder %v462, %v1934
        %vm1985 = vcmp.eq.s32.totalorder %v462, %v1949
        %vm1986 = vcmp.eq.s32.totalorder %v463, %v1934
        %vm1987 = vcmp.eq.s32.totalorder %v463, %v1949
        %vm1988 = vcmp.eq.s32.totalorder %v460, %v1964
        %vm1989 = vcmp.eq.s32.totalorder %v460, %v1979
        %vm1990 = vcmp.eq.s32.totalorder %v461, %v1964
        %vm1991 = vcmp.eq.s32.totalorder %v461, %v1979
        %vm1992 = vcmp.eq.s32.totalorder %v462, %v1964
        %vm1993 = vcmp.eq.s32.totalorder %v462, %v1979
        %vm1994 = vcmp.eq.s32.totalorder %v463, %v1964
        %vm1995 = vcmp.eq.s32.totalorder %v463, %v1979
        %v1996 = vsel %vm1980, inf, %v1824
        %v1997 = vsel %vm1981, inf, %v1825
        %v1998 = vsel %vm1982, inf, %v1826
        %v1999 = vsel %vm1983, inf, %v1827
        %v2000 = vsel %vm1984, inf, %v1828
        %v2001 = vsel %vm1985, inf, %v1829
        %v2002 = vsel %vm1986, inf, %v1830
        %v2003 = vsel %vm1987, inf, %v1831
        %v2004 = vsel %vm1988, inf, %v1832
        %v2005 = vsel %vm1989, inf, %v1833
        %v2006 = vsel %vm1990, inf, %v1834
        %v2007 = vsel %vm1991, inf, %v1835
        %v2008 = vsel %vm1992, inf, %v1836
        %v2009 = vsel %vm1993, inf, %v1837
        %v2010 = vsel %vm1994, inf, %v1838
        %v2011 = vsel %vm1995, inf, %v1839
        %v2012 = vmin.f32 %v1996, %v1998
        %v2013 = vmin.f32 %v2012, %v2000
        %v2014 = vmin.f32 %v2013, %v2002
        %v2015 = vrot.slane %v2014, 4
        %v2016 = vmin.f32 %v2014, %v2015
        %v2017 = vrot.slane %v2016, 2
        %v2018 = vmin.f32 %v2016, %v2017
        %v2019 = vrot.slane %v2018, 1
        %v2020 = vmin.f32 %v2018, %v2019
        %v2021 = vmin.f32 %v1997, %v1999
        %v2022 = vmin.f32 %v2021, %v2001
        %v2023 = vmin.f32 %v2022, %v2003
        %v2024 = vrot.slane %v2023, 4
        %v2025 = vmin.f32 %v2023, %v2024
        %v2026 = vrot.slane %v2025, 2
        %v2027 = vmin.f32 %v2025, %v2026
        %v2028 = vrot.slane %v2027, 1
        %v2029 = vmin.f32 %v2027, %v2028
        %v2030 = vmin.f32 %v2004, %v2006
        %v2031 = vmin.f32 %v2030, %v2008
        %v2032 = vmin.f32 %v2031, %v2010
        %v2033 = vrot.slane %v2032, 4
        %v2034 = vmin.f32 %v2032, %v2033
        %v2035 = vrot.slane %v2034, 2
        %v2036 = vmin.f32 %v2034, %v2035
        %v2037 = vrot.slane %v2036, 1
        %v2038 = vmin.f32 %v2036, %v2037
        %v2039 = vmin.f32 %v2005, %v2007
        %v2040 = vmin.f32 %v2039, %v2009
        %v2041 = vmin.f32 %v2040, %v2011
        %v2042 = vrot.slane %v2041, 4
        %v2043 = vmin.f32 %v2041, %v2042
        %v2044 = vrot.slane %v2043, 2
        %v2045 = vmin.f32 %v2043, %v2044
        %v2046 = vrot.slane %v2045, 1
        %v2047 = vmin.f32 %v2045, %v2046
        %vm2048 = vcmp.eq.f32.partialorder %v2020, -inf
        %vm2049 = vcmp.eq.f32.partialorder %v2029, -inf
        %vm2050 = vcmp.eq.f32.partialorder %v2038, -inf
        %vm2051 = vcmp.eq.f32.partialorder %v2047, -inf
        %v2052 = vsel %vm2048, 0.0, %v2020
        %v2053 = vsel %vm2049, 0.0, %v2029
        %v2054 = vsel %vm2050, 0.0, %v2038
        %v2055 = vsel %vm2051, 0.0, %v2047
        %v2056 = vadd.f32 %v1884, %v2052
        %v2057 = vadd.f32 %v1885, %v2053
        %v2058 = vadd.f32 %v1886, %v2054
        %v2059 = vadd.f32 %v1887, %v2055
        %vm2060 = vcmp.eq.f32.partialorder %v1996, %v2020
        %vm2061 = vcmp.eq.f32.partialorder %v1997, %v2029
        %vm2062 = vcmp.eq.f32.partialorder %v1998, %v2020
        %vm2063 = vcmp.eq.f32.partialorder %v1999, %v2029
        %vm2064 = vcmp.eq.f32.partialorder %v2000, %v2020
        %vm2065 = vcmp.eq.f32.partialorder %v2001, %v2029
        %vm2066 = vcmp.eq.f32.partialorder %v2002, %v2020
        %vm2067 = vcmp.eq.f32.partialorder %v2003, %v2029
        %vm2068 = vcmp.eq.f32.partialorder %v2004, %v2038
        %vm2069 = vcmp.eq.f32.partialorder %v2005, %v2047
        %vm2070 = vcmp.eq.f32.partialorder %v2006, %v2038
        %vm2071 = vcmp.eq.f32.partialorder %v2007, %v2047
        %vm2072 = vcmp.eq.f32.partialorder %v2008, %v2038
        %vm2073 = vcmp.eq.f32.partialorder %v2009, %v2047
        %vm2074 = vcmp.eq.f32.partialorder %v2010, %v2038
        %vm2075 = vcmp.eq.f32.partialorder %v2011, %v2047
        %v2076 = vsel %vm2060, %v460, 32
        %v2077 = vsel %vm2061, %v460, 32
        %v2078 = vsel %vm2062, %v461, 32
        %v2079 = vsel %vm2063, %v461, 32
        %v2080 = vsel %vm2064, %v462, 32
        %v2081 = vsel %vm2065, %v462, 32
        %v2082 = vsel %vm2066, %v463, 32
        %v2083 = vsel %vm2067, %v463, 32
        %v2084 = vsel %vm2068, %v460, 32
        %v2085 = vsel %vm2069, %v460, 32
        %v2086 = vsel %vm2070, %v461, 32
        %v2087 = vsel %vm2071, %v461, 32
        %v2088 = vsel %vm2072, %v462, 32
        %v2089 = vsel %vm2073, %v462, 32
        %v2090 = vsel %vm2074, %v463, 32
        %v2091 = vsel %vm2075, %v463, 32
        %vm2092 = vcmp.lt.s32.totalorder %v2076, %v2078
        %v2093 = vsel %vm2092, %v2076, %v2078
        %vm2094 = vcmp.lt.s32.totalorder %v2093, %v2080
        %v2095 = vsel %vm2094, %v2093, %v2080
        %vm2096 = vcmp.lt.s32.totalorder %v2095, %v2082
        %v2097 = vsel %vm2096, %v2095, %v2082
        %v2098 = vrot.slane %v2097, 4
        %vm2099 = vcmp.lt.s32.totalorder %v2097, %v2098
        %v2100 = vsel %vm2099, %v2097, %v2098
        %v2101 = vrot.slane %v2100, 2
        %vm2102 = vcmp.lt.s32.totalorder %v2100, %v2101
        %v2103 = vsel %vm2102, %v2100, %v2101
        %v2104 = vrot.slane %v2103, 1
        %vm2105 = vcmp.lt.s32.totalorder %v2103, %v2104
        %v2106 = vsel %vm2105, %v2103, %v2104
        %vm2107 = vcmp.lt.s32.totalorder %v2077, %v2079
        %v2108 = vsel %vm2107, %v2077, %v2079
        %vm2109 = vcmp.lt.s32.totalorder %v2108, %v2081
        %v2110 = vsel %vm2109, %v2108, %v2081
        %vm2111 = vcmp.lt.s32.totalorder %v2110, %v2083
        %v2112 = vsel %vm2111, %v2110, %v2083
        %v2113 = vrot.slane %v2112, 4
        %vm2114 = vcmp.lt.s32.totalorder %v2112, %v2113
        %v2115 = vsel %vm2114, %v2112, %v2113
        %v2116 = vrot.slane %v2115, 2
        %vm2117 = vcmp.lt.s32.totalorder %v2115, %v2116
        %v2118 = vsel %vm2117, %v2115, %v2116
        %v2119 = vrot.slane %v2118, 1
        %vm2120 = vcmp.lt.s32.totalorder %v2118, %v2119
        %v2121 = vsel %vm2120, %v2118, %v2119
        %vm2122 = vcmp.lt.s32.totalorder %v2084, %v2086
        %v2123 = vsel %vm2122, %v2084, %v2086
        %vm2124 = vcmp.lt.s32.totalorder %v2123, %v2088
        %v2125 = vsel %vm2124, %v2123, %v2088
        %vm2126 = vcmp.lt.s32.totalorder %v2125, %v2090
        %v2127 = vsel %vm2126, %v2125, %v2090
        %v2128 = vrot.slane %v2127, 4
        %vm2129 = vcmp.lt.s32.totalorder %v2127, %v2128
        %v2130 = vsel %vm2129, %v2127, %v2128
        %v2131 = vrot.slane %v2130, 2
        %vm2132 = vcmp.lt.s32.totalorder %v2130, %v2131
        %v2133 = vsel %vm2132, %v2130, %v2131
        %v2134 = vrot.slane %v2133, 1
        %vm2135 = vcmp.lt.s32.totalorder %v2133, %v2134
        %v2136 = vsel %vm2135, %v2133, %v2134
        %vm2137 = vcmp.lt.s32.totalorder %v2085, %v2087
        %v2138 = vsel %vm2137, %v2085, %v2087
        %vm2139 = vcmp.lt.s32.totalorder %v2138, %v2089
        %v2140 = vsel %vm2139, %v2138, %v2089
        %vm2141 = vcmp.lt.s32.totalorder %v2140, %v2091
        %v2142 = vsel %vm2141, %v2140, %v2091
        %v2143 = vrot.slane %v2142, 4
        %vm2144 = vcmp.lt.s32.totalorder %v2142, %v2143
        %v2145 = vsel %vm2144, %v2142, %v2143
        %v2146 = vrot.slane %v2145, 2
        %vm2147 = vcmp.lt.s32.totalorder %v2145, %v2146
        %v2148 = vsel %vm2147, %v2145, %v2146
        %v2149 = vrot.slane %v2148, 1
        %vm2150 = vcmp.lt.s32.totalorder %v2148, %v2149
        %v2151 = vsel %vm2150, %v2148, %v2149
        %vm2152 = vcmp.eq.s32.totalorder %v460, %v2106
        %vm2153 = vcmp.eq.s32.totalorder %v460, %v2121
        %vm2154 = vcmp.eq.s32.totalorder %v461, %v2106
        %vm2155 = vcmp.eq.s32.totalorder %v461, %v2121
        %vm2156 = vcmp.eq.s32.totalorder %v462, %v2106
        %vm2157 = vcmp.eq.s32.totalorder %v462, %v2121
        %vm2158 = vcmp.eq.s32.totalorder %v463, %v2106
        %vm2159 = vcmp.eq.s32.totalorder %v463, %v2121
        %vm2160 = vcmp.eq.s32.totalorder %v460, %v2136
        %vm2161 = vcmp.eq.s32.totalorder %v460, %v2151
        %vm2162 = vcmp.eq.s32.totalorder %v461, %v2136
        %vm2163 = vcmp.eq.s32.totalorder %v461, %v2151
        %vm2164 = vcmp.eq.s32.totalorder %v462, %v2136
        %vm2165 = vcmp.eq.s32.totalorder %v462, %v2151
        %vm2166 = vcmp.eq.s32.totalorder %v463, %v2136
        %vm2167 = vcmp.eq.s32.totalorder %v463, %v2151
        %v2168 = vsel %vm2152, inf, %v1996
        %v2169 = vsel %vm2153, inf, %v1997
        %v2170 = vsel %vm2154, inf, %v1998
        %v2171 = vsel %vm2155, inf, %v1999
        %v2172 = vsel %vm2156, inf, %v2000
        %v2173 = vsel %vm2157, inf, %v2001
        %v2174 = vsel %vm2158, inf, %v2002
        %v2175 = vsel %vm2159, inf, %v2003
        %v2176 = vsel %vm2160, inf, %v2004
        %v2177 = vsel %vm2161, inf, %v2005
        %v2178 = vsel %vm2162, inf, %v2006
        %v2179 = vsel %vm2163, inf, %v2007
        %v2180 = vsel %vm2164, inf, %v2008
        %v2181 = vsel %vm2165, inf, %v2009
        %v2182 = vsel %vm2166, inf, %v2010
        %v2183 = vsel %vm2167, inf, %v2011
        %v2184 = vmin.f32 %v2168, %v2170
        %v2185 = vmin.f32 %v2184, %v2172
        %v2186 = vmin.f32 %v2185, %v2174
        %v2187 = vrot.slane %v2186, 4
        %v2188 = vmin.f32 %v2186, %v2187
        %v2189 = vrot.slane %v2188, 2
        %v2190 = vmin.f32 %v2188, %v2189
        %v2191 = vrot.slane %v2190, 1
        %v2192 = vmin.f32 %v2190, %v2191
        %v2193 = vmin.f32 %v2169, %v2171
        %v2194 = vmin.f32 %v2193, %v2173
        %v2195 = vmin.f32 %v2194, %v2175
        %v2196 = vrot.slane %v2195, 4
        %v2197 = vmin.f32 %v2195, %v2196
        %v2198 = vrot.slane %v2197, 2
        %v2199 = vmin.f32 %v2197, %v2198
        %v2200 = vrot.slane %v2199, 1
        %v2201 = vmin.f32 %v2199, %v2200
        %v2202 = vmin.f32 %v2176, %v2178
        %v2203 = vmin.f32 %v2202, %v2180
        %v2204 = vmin.f32 %v2203, %v2182
        %v2205 = vrot.slane %v2204, 4
        %v2206 = vmin.f32 %v2204, %v2205
        %v2207 = vrot.slane %v2206, 2
        %v2208 = vmin.f32 %v2206, %v2207
        %v2209 = vrot.slane %v2208, 1
        %v2210 = vmin.f32 %v2208, %v2209
        %v2211 = vmin.f32 %v2177, %v2179
        %v2212 = vmin.f32 %v2211, %v2181
        %v2213 = vmin.f32 %v2212, %v2183
        %v2214 = vrot.slane %v2213, 4
        %v2215 = vmin.f32 %v2213, %v2214
        %v2216 = vrot.slane %v2215, 2
        %v2217 = vmin.f32 %v2215, %v2216
        %v2218 = vrot.slane %v2217, 1
        %v2219 = vmin.f32 %v2217, %v2218
        %vm2220 = vcmp.eq.f32.partialorder %v2192, -inf
        %vm2221 = vcmp.eq.f32.partialorder %v2201, -inf
        %vm2222 = vcmp.eq.f32.partialorder %v2210, -inf
        %vm2223 = vcmp.eq.f32.partialorder %v2219, -inf
        %v2224 = vsel %vm2220, 0.0, %v2192
        %v2225 = vsel %vm2221, 0.0, %v2201
        %v2226 = vsel %vm2222, 0.0, %v2210
        %v2227 = vsel %vm2223, 0.0, %v2219
        %v2228 = vadd.f32 %v2056, %v2224
        %v2229 = vadd.f32 %v2057, %v2225
        %v2230 = vadd.f32 %v2058, %v2226
        %v2231 = vadd.f32 %v2059, %v2227
        %vm2232 = vcmp.eq.f32.partialorder %v2168, %v2192
        %vm2233 = vcmp.eq.f32.partialorder %v2169, %v2201
        %vm2234 = vcmp.eq.f32.partialorder %v2170, %v2192
        %vm2235 = vcmp.eq.f32.partialorder %v2171, %v2201
        %vm2236 = vcmp.eq.f32.partialorder %v2172, %v2192
        %vm2237 = vcmp.eq.f32.partialorder %v2173, %v2201
        %vm2238 = vcmp.eq.f32.partialorder %v2174, %v2192
        %vm2239 = vcmp.eq.f32.partialorder %v2175, %v2201
        %vm2240 = vcmp.eq.f32.partialorder %v2176, %v2210
        %vm2241 = vcmp.eq.f32.partialorder %v2177, %v2219
        %vm2242 = vcmp.eq.f32.partialorder %v2178, %v2210
        %vm2243 = vcmp.eq.f32.partialorder %v2179, %v2219
        %vm2244 = vcmp.eq.f32.partialorder %v2180, %v2210
        %vm2245 = vcmp.eq.f32.partialorder %v2181, %v2219
        %vm2246 = vcmp.eq.f32.partialorder %v2182, %v2210
        %vm2247 = vcmp.eq.f32.partialorder %v2183, %v2219
        %v2248 = vsel %vm2232, %v460, 32
        %v2249 = vsel %vm2233, %v460, 32
        %v2250 = vsel %vm2234, %v461, 32
        %v2251 = vsel %vm2235, %v461, 32
        %v2252 = vsel %vm2236, %v462, 32
        %v2253 = vsel %vm2237, %v462, 32
        %v2254 = vsel %vm2238, %v463, 32
        %v2255 = vsel %vm2239, %v463, 32
        %v2256 = vsel %vm2240, %v460, 32
        %v2257 = vsel %vm2241, %v460, 32
        %v2258 = vsel %vm2242, %v461, 32
        %v2259 = vsel %vm2243, %v461, 32
        %v2260 = vsel %vm2244, %v462, 32
        %v2261 = vsel %vm2245, %v462, 32
        %v2262 = vsel %vm2246, %v463, 32
        %v2263 = vsel %vm2247, %v463, 32
        %vm2264 = vcmp.lt.s32.totalorder %v2248, %v2250
        %v2265 = vsel %vm2264, %v2248, %v2250
        %vm2266 = vcmp.lt.s32.totalorder %v2265, %v2252
        %v2267 = vsel %vm2266, %v2265, %v2252
        %vm2268 = vcmp.lt.s32.totalorder %v2267, %v2254
        %v2269 = vsel %vm2268, %v2267, %v2254
        %v2270 = vrot.slane %v2269, 4
        %vm2271 = vcmp.lt.s32.totalorder %v2269, %v2270
        %v2272 = vsel %vm2271, %v2269, %v2270
        %v2273 = vrot.slane %v2272, 2
        %vm2274 = vcmp.lt.s32.totalorder %v2272, %v2273
        %v2275 = vsel %vm2274, %v2272, %v2273
        %v2276 = vrot.slane %v2275, 1
        %vm2277 = vcmp.lt.s32.totalorder %v2275, %v2276
        %v2278 = vsel %vm2277, %v2275, %v2276
        %vm2279 = vcmp.lt.s32.totalorder %v2249, %v2251
        %v2280 = vsel %vm2279, %v2249, %v2251
        %vm2281 = vcmp.lt.s32.totalorder %v2280, %v2253
        %v2282 = vsel %vm2281, %v2280, %v2253
        %vm2283 = vcmp.lt.s32.totalorder %v2282, %v2255
        %v2284 = vsel %vm2283, %v2282, %v2255
        %v2285 = vrot.slane %v2284, 4
        %vm2286 = vcmp.lt.s32.totalorder %v2284, %v2285
        %v2287 = vsel %vm2286, %v2284, %v2285
        %v2288 = vrot.slane %v2287, 2
        %vm2289 = vcmp.lt.s32.totalorder %v2287, %v2288
        %v2290 = vsel %vm2289, %v2287, %v2288
        %v2291 = vrot.slane %v2290, 1
        %vm2292 = vcmp.lt.s32.totalorder %v2290, %v2291
        %v2293 = vsel %vm2292, %v2290, %v2291
        %vm2294 = vcmp.lt.s32.totalorder %v2256, %v2258
        %v2295 = vsel %vm2294, %v2256, %v2258
        %vm2296 = vcmp.lt.s32.totalorder %v2295, %v2260
        %v2297 = vsel %vm2296, %v2295, %v2260
        %vm2298 = vcmp.lt.s32.totalorder %v2297, %v2262
        %v2299 = vsel %vm2298, %v2297, %v2262
        %v2300 = vrot.slane %v2299, 4
        %vm2301 = vcmp.lt.s32.totalorder %v2299, %v2300
        %v2302 = vsel %vm2301, %v2299, %v2300
        %v2303 = vrot.slane %v2302, 2
        %vm2304 = vcmp.lt.s32.totalorder %v2302, %v2303
        %v2305 = vsel %vm2304, %v2302, %v2303
        %v2306 = vrot.slane %v2305, 1
        %vm2307 = vcmp.lt.s32.totalorder %v2305, %v2306
        %v2308 = vsel %vm2307, %v2305, %v2306
        %vm2309 = vcmp.lt.s32.totalorder %v2257, %v2259
        %v2310 = vsel %vm2309, %v2257, %v2259
        %vm2311 = vcmp.lt.s32.totalorder %v2310, %v2261
        %v2312 = vsel %vm2311, %v2310, %v2261
        %vm2313 = vcmp.lt.s32.totalorder %v2312, %v2263
        %v2314 = vsel %vm2313, %v2312, %v2263
        %v2315 = vrot.slane %v2314, 4
        %vm2316 = vcmp.lt.s32.totalorder %v2314, %v2315
        %v2317 = vsel %vm2316, %v2314, %v2315
        %v2318 = vrot.slane %v2317, 2
        %vm2319 = vcmp.lt.s32.totalorder %v2317, %v2318
        %v2320 = vsel %vm2319, %v2317, %v2318
        %v2321 = vrot.slane %v2320, 1
        %vm2322 = vcmp.lt.s32.totalorder %v2320, %v2321
        %v2323 = vsel %vm2322, %v2320, %v2321
        %vm2324 = vcmp.eq.s32.totalorder %v460, %v2278
        %vm2325 = vcmp.eq.s32.totalorder %v460, %v2293
        %vm2326 = vcmp.eq.s32.totalorder %v461, %v2278
        %vm2327 = vcmp.eq.s32.totalorder %v461, %v2293
        %vm2328 = vcmp.eq.s32.totalorder %v462, %v2278
        %vm2329 = vcmp.eq.s32.totalorder %v462, %v2293
        %vm2330 = vcmp.eq.s32.totalorder %v463, %v2278
        %vm2331 = vcmp.eq.s32.totalorder %v463, %v2293
        %vm2332 = vcmp.eq.s32.totalorder %v460, %v2308
        %vm2333 = vcmp.eq.s32.totalorder %v460, %v2323
        %vm2334 = vcmp.eq.s32.totalorder %v461, %v2308
        %vm2335 = vcmp.eq.s32.totalorder %v461, %v2323
        %vm2336 = vcmp.eq.s32.totalorder %v462, %v2308
        %vm2337 = vcmp.eq.s32.totalorder %v462, %v2323
        %vm2338 = vcmp.eq.s32.totalorder %v463, %v2308
        %vm2339 = vcmp.eq.s32.totalorder %v463, %v2323
        %v2340 = vsel %vm2324, inf, %v2168
        %v2341 = vsel %vm2325, inf, %v2169
        %v2342 = vsel %vm2326, inf, %v2170
        %v2343 = vsel %vm2327, inf, %v2171
        %v2344 = vsel %vm2328, inf, %v2172
        %v2345 = vsel %vm2329, inf, %v2173
        %v2346 = vsel %vm2330, inf, %v2174
        %v2347 = vsel %vm2331, inf, %v2175
        %v2348 = vsel %vm2332, inf, %v2176
        %v2349 = vsel %vm2333, inf, %v2177
        %v2350 = vsel %vm2334, inf, %v2178
        %v2351 = vsel %vm2335, inf, %v2179
        %v2352 = vsel %vm2336, inf, %v2180
        %v2353 = vsel %vm2337, inf, %v2181
        %v2354 = vsel %vm2338, inf, %v2182
        %v2355 = vsel %vm2339, inf, %v2183
        %v2356 = vmin.f32 %v2340, %v2342
        %v2357 = vmin.f32 %v2356, %v2344
        %v2358 = vmin.f32 %v2357, %v2346
        %v2359 = vrot.slane %v2358, 4
        %v2360 = vmin.f32 %v2358, %v2359
        %v2361 = vrot.slane %v2360, 2
        %v2362 = vmin.f32 %v2360, %v2361
        %v2363 = vrot.slane %v2362, 1
        %v2364 = vmin.f32 %v2362, %v2363
        %v2365 = vmin.f32 %v2341, %v2343
        %v2366 = vmin.f32 %v2365, %v2345
        %v2367 = vmin.f32 %v2366, %v2347
        %v2368 = vrot.slane %v2367, 4
        %v2369 = vmin.f32 %v2367, %v2368
        %v2370 = vrot.slane %v2369, 2
        %v2371 = vmin.f32 %v2369, %v2370
        %v2372 = vrot.slane %v2371, 1
        %v2373 = vmin.f32 %v2371, %v2372
        %v2374 = vmin.f32 %v2348, %v2350
        %v2375 = vmin.f32 %v2374, %v2352
        %v2376 = vmin.f32 %v2375, %v2354
        %v2377 = vrot.slane %v2376, 4
        %v2378 = vmin.f32 %v2376, %v2377
        %v2379 = vrot.slane %v2378, 2
        %v2380 = vmin.f32 %v2378, %v2379
        %v2381 = vrot.slane %v2380, 1
        %v2382 = vmin.f32 %v2380, %v2381
        %v2383 = vmin.f32 %v2349, %v2351
        %v2384 = vmin.f32 %v2383, %v2353
        %v2385 = vmin.f32 %v2384, %v2355
        %v2386 = vrot.slane %v2385, 4
        %v2387 = vmin.f32 %v2385, %v2386
        %v2388 = vrot.slane %v2387, 2
        %v2389 = vmin.f32 %v2387, %v2388
        %v2390 = vrot.slane %v2389, 1
        %v2391 = vmin.f32 %v2389, %v2390
        %vm2392 = vcmp.eq.f32.partialorder %v2364, -inf
        %vm2393 = vcmp.eq.f32.partialorder %v2373, -inf
        %vm2394 = vcmp.eq.f32.partialorder %v2382, -inf
        %vm2395 = vcmp.eq.f32.partialorder %v2391, -inf
        %v2396 = vsel %vm2392, 0.0, %v2364
        %v2397 = vsel %vm2393, 0.0, %v2373
        %v2398 = vsel %vm2394, 0.0, %v2382
        %v2399 = vsel %vm2395, 0.0, %v2391
        %v2400 = vadd.f32 %v2228, %v2396
        %v2401 = vadd.f32 %v2229, %v2397
        %v2402 = vadd.f32 %v2230, %v2398
        %v2403 = vadd.f32 %v2231, %v2399
        %v2404 = vsub.f32 %v352, %v2400
        %v2405 = vsub.f32 %v361, %v2401
        %v2406 = vsub.f32 %v370, %v2402
        %v2407 = vsub.f32 %v379, %v2403
        %v2408 = vmul.f32 %v2404, 0.05
        %v2409 = vmul.f32 %v2405, 0.05
        %v2410 = vmul.f32 %v2406, 0.05
        %v2411 = vmul.f32 %v2407, 0.05
        %v2416 = vrot.slane %v341, 7
        %v2417 = vrot.slane %v343, 7
        %vm2418 = vcmask 1040384
        %v2419 = vsel %vm2418, %v340, %v2416
        %v2420 = vsel %vm2418, %v342, %v2417
        %v2423 = vlaneseq
        %vm2424 = vcmp.ge.s32.totalorder %v2423, 0
        %vm2425 = vcmp.lt.s32.totalorder %v2423, 256
        %vm2426 = vmand %vm2424, %vm2425
        %2427 = vst.msk [vmem:[%s194] ss:$4 sm:$0x3] %vm2426, %v2419
        %s2428 = scalar_lea.vmem %s194, 8
        %2429 = vst.msk [vmem:[%s2428] ss:$4 sm:$0x3] %vm2426, %v2420
        %v2434 = vrot.slane %v442, 7
        %v2435 = vrot.slane %v458, 7
        %v2436 = vsel %vm2418, %v441, %v2434
        %v2437 = vsel %vm2418, %v457, %v2435
        %s2440 = scalar_lea.vmem %s194, 1
        %2441 = vst.msk [vmem:[%s2440] ss:$4 sm:$0x3] %vm2426, %v2436
        %s2442 = scalar_lea.vmem %s194, 9
        %2443 = vst.msk [vmem:[%s2442] ss:$4 sm:$0x3] %vm2426, %v2437
        %v2448 = vrot.slane %v2409, 7
        %v2449 = vrot.slane %v2411, 7
        %v2450 = vsel %vm2418, %v2408, %v2448
        %v2451 = vsel %vm2418, %v2410, %v2449
        %s2454 = scalar_lea.vmem %s194, 2
        %2455 = vst.msk [vmem:[%s2454] ss:$4 sm:$0x3] %vm2426, %v2450
        %s2456 = scalar_lea.vmem %s194, 10
        %2457 = vst.msk [vmem:[%s2456] ss:$4 sm:$0x3] %vm2426, %v2451
        %s2458 = smul.u32 2, %s16
        %p2459 = scmp.lt.s32.totalorder %s2458, 3
        %s2460 = scalar_select %p2459, %s2458, 3
        %s2461 = smul.addr %s2460, 2
        %s2462 = smul.addr %s2461, 4
        %s2463 = scalar_lea.vmem %s2, %s2462
        // Predicated region
        $region33: #{tpu_custom_call.1} parent=27 // pred_check
          %p2464 = pneg %p86
        $region34: #{tpu_custom_call.1} parent=27 // pred_check_branch
          %2466 = sbr.rel (%p2464) target = $region36
        $region35: #{tpu_custom_call.1} parent=27 // pred_region
          %s2467 = smul.u32 2, %s16
        $region36: #{tpu_custom_call.1} parent=27 // pred_fallthru
          _
      $region28: #{tpu_custom_call.1} parent=5 // pred_fallthru
        _
      %p2468 = scmp.le.s32.totalorder 2, %s11
      // Predicated region
      $region37: #{tpu_custom_call.1} parent=5 // pred_check
        %p2469 = pneg %p2468
      $region38: #{tpu_custom_call.1} parent=5 // pred_check_branch
        %2471 = sbr.rel (%p2469) target = $region40
      $region39: #{tpu_custom_call.1} parent=5 // pred_region
        %s2472 = ssub.s32 %s11, 2
        // Predicated region
        $region41: #{tpu_custom_call.1} parent=39 // pred_check
          %p2473 = pneg %p92
        $region42: #{tpu_custom_call.1} parent=39 // pred_check_branch
          %2475 = sbr.rel (%p2473) target = $region44
        $region43: #{tpu_custom_call.1} parent=39 // pred_region
          %s2476 = smul.u32 2, %s17
          %p2477 = scmp.lt.s32.totalorder %s2476, 3
          %s2478 = scalar_select %p2477, %s2476, 3
          %s2479 = smul.addr %s2478, 2
          %s2480 = smul.addr %s2479, 4
          %s2481 = scalar_lea.vmem %s2, %s2480
        $region44: #{tpu_custom_call.1} parent=39 // pred_fallthru
          _
      $region40: #{tpu_custom_call.1} parent=5 // pred_fallthru
        _
    $region6: #{tpu_custom_call.1} parent=1 // loop_footer
      %s15 = sadd.s32 1, %s11
    $region7: #{tpu_custom_call.1} parent=1 // loop_footer_branch
      %10 = sbr.rel target = $region3
    $region8: #{tpu_custom_call.1} parent=1 // loop_exit
      _
    %2482 = vsyncpa [#allocation3], 1
    %s2483 = scalar_lea.sflag [#allocation3], 1
    %2484 = vsyncpa %s2483, 1

</llo_original>
